<compile_context>
chip_gen: v7x
topology: tpu7x:2x2x1
jax: 0.10.0
libtpu: 0.0.40
codegen_flags: <defaults>
</compile_context>

<pallas_src>
import jax
import jax.numpy as jnp
from jax.experimental import pallas as pl
from jax.experimental.pallas import tpu as pltpu


def _round_up(n, m):
    return ((n + m - 1) // m) * m


# --------------------------------- kernels ----------------------------------

def _mlp_resident_kernel(x_ref, w1_ref, b1_ref, w2_ref, b2_ref, o_ref):
    # out = relu(x @ W1 + b1) @ W2 + b2 ; dropout == identity (eval mode).
    x = x_ref[...].astype(w1_ref.dtype)                 # f32 -> bf16 inside the kernel
    h = jnp.dot(x, w1_ref[...], preferred_element_type=jnp.float32)
    h = jnp.maximum(h + b1_ref[...], 0.0)                # bias + ReLU in f32
    out = jnp.dot(h.astype(w2_ref.dtype), w2_ref[...],
                  preferred_element_type=jnp.float32)
    o_ref[...] = (out + b2_ref[...]).astype(o_ref.dtype)


def _mlp_hidden_tiled_kernel(x_ref, w1_ref, b1_ref, w2_ref, b2_ref, o_ref, acc_ref):
    # Hidden dim tiled: ReLU is elementwise over hidden and the second matmul sums
    # over hidden, so per-hidden-tile partial products accumulate exactly.
    k = pl.program_id(1)

    @pl.when(k == 0)
    def _():
        acc_ref[...] = jnp.zeros_like(acc_ref)

    x = x_ref[...].astype(w1_ref.dtype)
    h = jnp.dot(x, w1_ref[...], preferred_element_type=jnp.float32)
    h = jnp.maximum(h + b1_ref[...], 0.0)
    acc_ref[...] += jnp.dot(h.astype(w2_ref.dtype), w2_ref[...],
                            preferred_element_type=jnp.float32)

    @pl.when(k == pl.num_programs(1) - 1)
    def _():
        o_ref[...] = (acc_ref[...] + b2_ref[...]).astype(o_ref.dtype)


# ----------------------------- one-time weight prep --------------------------

def prepare_fc_params(w1, b1, w2, b2, param_dtype=jnp.bfloat16):
    """One-time parameter prep (call at model setup, NOT per forward):
    pad hidden/output lane dims to multiples of 128 (lane-dense MXU/store path)
    and cast matmul operands to bf16.  Zero padding is exact: padded hidden cols
    are relu(0+0)=0 and hit zero W2 rows; padded out cols are sliced off."""
    in_dim, hid = w1.shape
    out_dim = w2.shape[1]
    hid_p = _round_up(hid, 128)
    out_p = _round_up(out_dim, 128)
    return dict(
        w1=jnp.pad(w1, ((0, 0), (0, hid_p - hid))).astype(param_dtype),
        b1=jnp.pad(jnp.reshape(b1, (1, hid)), ((0, 0), (0, hid_p - hid))).astype(jnp.float32),
        w2=jnp.pad(w2, ((0, hid_p - hid), (0, out_p - out_dim))).astype(param_dtype),
        b2=jnp.pad(jnp.reshape(b2, (1, out_dim)), ((0, 0), (0, out_p - out_dim))).astype(jnp.float32),
        in_dim=in_dim, hid=hid, out_dim=out_dim, hid_p=hid_p, out_p=out_p,
    )


# --------------------------------- forward -----------------------------------

def fc_layer_forward(x, params, *, block_bs=256, hidden_block=512,
                     resident_weight_budget=40 << 20, out_dtype=jnp.float32):
    """x: (BS, input_size) f32 (or bf16); params: output of prepare_fc_params.
    Returns (BS, output_size) in out_dtype."""
    bs, in_dim = x.shape
    assert in_dim == params["in_dim"], "x feature dim does not match prepared weights"
    hid_p, out_p, out_dim = params["hid_p"], params["out_p"], params["out_dim"]
    w1, b1, w2, b2 = params["w1"], params["b1"], params["w2"], params["b2"]
    wbytes = w1.dtype.itemsize

    # ---- batch tiling: one grid step for small batches, else block_bs-row tiles ----
    tb_single = _round_up(bs, 16)                 # bf16 packs 16 rows per vreg tile
    if tb_single <= 2 * block_bs:
        tb, bs_p = tb_single, tb_single           # grid-step overhead dominates tiny MLPs
    else:
        tb = _round_up(block_bs, 16)
        bs_p = _round_up(bs, tb)
    grid_m = bs_p // tb

    # Only the batch dim is padded (and only if needed); lane dim stays = in_dim.
    x_p = x if bs_p == bs else jnp.pad(x, ((0, bs_p - bs), (0, 0)))
    xbytes = x_p.dtype.itemsize

    resident_bytes = (in_dim * hid_p + hid_p * out_p) * wbytes + (hid_p + out_p) * 4
    stream_bytes = 2 * (tb * in_dim * xbytes + tb * out_p * 4)   # double-buffered x/out tiles

    if resident_bytes <= resident_weight_budget:
        # ------------------ fully weight-resident path ------------------
        grid = (grid_m,)

        def make_in_specs(single_buffer_weights):
            if single_buffer_weights:
                # Grid-invariant blocks: single-buffer them (halves pinned VMEM).
                wspec = lambda shp, im: pl.BlockSpec(shp, im, pipeline_mode=pl.Buffered(1))
            else:
                wspec = lambda shp, im: pl.BlockSpec(shp, im)
            return [
                pl.BlockSpec((tb, in_dim), lambda i: (i, 0)),     # x: streams over batch
                wspec((in_dim, hid_p), lambda i: (0, 0)),         # W1: weight-stationary
                wspec((1, hid_p), lambda i: (0, 0)),              # b1
                wspec((hid_p, out_p), lambda i: (0, 0)),          # W2: weight-stationary
                wspec((1, out_p), lambda i: (0, 0)),              # b2
            ]

        out_specs = pl.BlockSpec((tb, out_p), lambda i: (i, 0))
        scratch = []
        kernel = _mlp_resident_kernel
        semantics = ("parallel",)
        vmem_needed = stream_bytes + resident_bytes
    else:
        # --------- hidden-dim-tiled fallback (weights too big to keep resident) ---------
        th = min(_round_up(hidden_block, 128), hid_p)
        while hid_p % th:                        # hid_p is a multiple of 128 -> terminates
            th -= 128
        grid_k = hid_p // th
        grid = (grid_m, grid_k)

        def make_in_specs(single_buffer_weights):
            if single_buffer_weights:
                inv = lambda shp, im: pl.BlockSpec(shp, im, pipeline_mode=pl.Buffered(1))
            else:
                inv = lambda shp, im: pl.BlockSpec(shp, im)
            return [
                pl.BlockSpec((tb, in_dim), lambda i, k: (i, 0)),   # x tile (revisited over k)
                pl.BlockSpec((in_dim, th), lambda i, k: (0, k)),   # W1 hidden tile (streams)
                pl.BlockSpec((1, th), lambda i, k: (0, k)),        # b1 hidden tile
                pl.BlockSpec((th, out_p), lambda i, k: (k, 0)),    # W2 hidden tile (streams)
                inv((1, out_p), lambda i, k: (0, 0)),              # b2: grid-invariant
            ]

        out_specs = pl.BlockSpec((tb, out_p), lambda i, k: (i, 0))
        scratch = [pltpu.VMEM((tb, out_p), jnp.float32)]           # f32 accumulator
        kernel = _mlp_hidden_tiled_kernel
        semantics = ("parallel", "arbitrary")
        vmem_needed = (stream_bytes
                       + 2 * (in_dim * th + th * out_p) * wbytes   # double-buffered W tiles
                       + 2 * th * 4 + out_p * 4                    # b1 tiles + b2
                       + tb * out_p * 4)                           # accumulator

    # v7x-aware VMEM request: footprint + headroom, capped below 64 MiB physical VMEM.
    vmem_limit = int(min(max(vmem_needed + (8 << 20), 16 << 20), 48 << 20))

    def run(single_buffer_weights):
        return pl.pallas_call(
            kernel,
            out_shape=jax.ShapeDtypeStruct((bs_p, out_p), out_dtype),
            grid=grid,
            in_specs=make_in_specs(single_buffer_weights),
            out_specs=out_specs,
            scratch_shapes=scratch,
            compiler_params=pltpu.CompilerParams(
                dimension_semantics=semantics,
                vmem_limit_bytes=vmem_limit,
            ),
        )(x_p, w1, b1, w2, b2)

    try:
        out_padded = run(True)
    except Exception:
        # Portability fallback: if this JAX/Mosaic build rejects
        # pipeline_mode=pl.Buffered(1), use default (double-buffered) specs.
        out_padded = run(False)

    return out_padded[:bs, :out_dim]


# ----------------------------------- demo ------------------------------------

if __name__ == "__main__":
    # Small, deliberately non-128-aligned shapes (batch=300, in=96, hid=160, out=24).
    BS, INPUT, HIDDEN, OUTPUT = 300, 96, 160, 24

    key = jax.random.PRNGKey(0)
    kx, kw1, kb1, kw2, kb2 = jax.random.split(key, 5)

    x = jax.random.normal(kx, (BS, INPUT), dtype=jnp.float32)
    # Weights stored pre-transposed as (in, out) = PyTorch Linear's W.T.
    w1 = jax.random.normal(kw1, (INPUT, HIDDEN), dtype=jnp.float32) * 0.05
    b1 = jax.random.normal(kb1, (HIDDEN,), dtype=jnp.float32) * 0.05
    w2 = jax.random.normal(kw2, (HIDDEN, OUTPUT), dtype=jnp.float32) * 0.05
    b2 = jax.random.normal(kb2, (OUTPUT,), dtype=jnp.float32) * 0.05

    # One-time weight prep (pad + bf16 cast) -- hoisted out of the forward call.
    params = jax.block_until_ready(prepare_fc_params(w1, b1, w2, b2))

    # Main path: small batch -> single grid step, weights fully resident.
    out = jax.block_until_ready(fc_layer_forward(x, params))

    # Also exercise the hidden-dim-tiled fallback (forced tiny residency budget)
    # and multi-tile batch streaming.
    out_tiled = jax.block_until_ready(
        fc_layer_forward(x, params, block_bs=64, hidden_block=128,
                         resident_weight_budget=0))

    # References: bf16-operand / f32-accumulate path and full-f32 path.
    def bf(a):
        return a.astype(jnp.bfloat16).astype(jnp.float32)

    h_ref = jnp.maximum(bf(x) @ bf(w1) + b1[None, :], 0.0)
    ref = bf(h_ref) @ bf(w2) + b2[None, :]
    ref_f32 = jnp.maximum(x @ w1 + b1[None, :], 0.0) @ w2 + b2[None, :]

    assert out.shape == (BS, OUTPUT)
    assert jnp.allclose(out, ref, atol=2e-3, rtol=2e-3), "resident path mismatch vs bf16 reference"
    assert jnp.allclose(out, ref_f32, atol=5e-2, rtol=5e-2), "resident path mismatch vs f32 reference"
    assert jnp.allclose(out_tiled, ref, atol=2e-3, rtol=2e-3), "tiled path mismatch vs bf16 reference"
    assert jnp.allclose(out_tiled, out, atol=2e-3, rtol=2e-3), "tiled vs resident path mismatch"

    print("KERNEL_OK")
</pallas_src>

<mosaic_0001>
module attributes {stable_mosaic.version = 11 : i64} {
  func.func @_mlp_resident_kernel(%arg0: i32, %arg1: memref<304x96xf32, #tpu.memory_space<vmem>>, %arg2: memref<96x256xbf16, #tpu.memory_space<vmem>>, %arg3: memref<1x256xf32, #tpu.memory_space<vmem>>, %arg4: memref<256x128xbf16, #tpu.memory_space<vmem>>, %arg5: memref<1x128xf32, #tpu.memory_space<vmem>>, %arg6: memref<304x128xf32, #tpu.memory_space<vmem>>) attributes {dimension_semantics = [#tpu.dimension_semantics<parallel>], iteration_bounds = array<i64: 1>, scalar_prefetch = 0 : i64, scratch_operands = 0 : i64, tpu.core_type = #tpu.core_type<tc>, window_params = [{transform_indices = @transform_0, window_bounds = array<i64: 304, 96>}, {pipeline_mode = #tpu.pipeline_mode<synchronous>, transform_indices = @transform_1, window_bounds = array<i64: 96, 256>}, {pipeline_mode = #tpu.pipeline_mode<synchronous>, transform_indices = @transform_2, window_bounds = array<i64: 1, 256>}, {pipeline_mode = #tpu.pipeline_mode<synchronous>, transform_indices = @transform_3, window_bounds = array<i64: 256, 128>}, {pipeline_mode = #tpu.pipeline_mode<synchronous>, transform_indices = @transform_4, window_bounds = array<i64: 1, 128>}, {transform_indices = @transform_5, window_bounds = array<i64: 304, 128>}]} {
    %c0 = arith.constant 0 : index
    %c0_0 = arith.constant 0 : index
    %0 = vector.load %arg1[%c0, %c0_0] : memref<304x96xf32, #tpu.memory_space<vmem>>, vector<304x96xf32>
    %1 = arith.truncf %0 : vector<304x96xf32> to vector<304x96xbf16>
    %c0_1 = arith.constant 0 : index
    %c0_2 = arith.constant 0 : index
    %2 = vector.load %arg2[%c0_1, %c0_2] : memref<96x256xbf16, #tpu.memory_space<vmem>>, vector<96x256xbf16>
    %cst = arith.constant dense<0.000000e+00> : vector<304x256xf32>
    %3 = tpu.matmul %1, %2, %cst {dimension_numbers = #tpu.dot_dimension_numbers<[1], [0], [0], [1], [0, 0, 1, 1], [], []>} : vector<304x96xbf16>, vector<96x256xbf16>, vector<304x256xf32> -> vector<304x256xf32>
    %c0_3 = arith.constant 0 : index
    %c0_4 = arith.constant 0 : index
    %4 = vector.load %arg3[%c0_3, %c0_4] : memref<1x256xf32, #tpu.memory_space<vmem>>, vector<1x256xf32>
    %5 = vector.broadcast %4 : vector<1x256xf32> to vector<304x256xf32>
    %6 = arith.addf %3, %5 : vector<304x256xf32>
    %cst_5 = arith.constant 0.000000e+00 : f32
    %7 = vector.broadcast %cst_5 : f32 to vector<304x256xf32>
    %8 = arith.maximumf %6, %7 : vector<304x256xf32>
    %9 = arith.truncf %8 : vector<304x256xf32> to vector<304x256xbf16>
    %c0_6 = arith.constant 0 : index
    %c0_7 = arith.constant 0 : index
    %10 = vector.load %arg4[%c0_6, %c0_7] : memref<256x128xbf16, #tpu.memory_space<vmem>>, vector<256x128xbf16>
    %cst_8 = arith.constant dense<0.000000e+00> : vector<304x128xf32>
    %11 = tpu.matmul %9, %10, %cst_8 {dimension_numbers = #tpu.dot_dimension_numbers<[1], [0], [0], [1], [0, 0, 1, 1], [], []>} : vector<304x256xbf16>, vector<256x128xbf16>, vector<304x128xf32> -> vector<304x128xf32>
    %c0_9 = arith.constant 0 : index
    %c0_10 = arith.constant 0 : index
    %12 = vector.load %arg5[%c0_9, %c0_10] : memref<1x128xf32, #tpu.memory_space<vmem>>, vector<1x128xf32>
    %13 = vector.broadcast %12 : vector<1x128xf32> to vector<304x128xf32>
    %14 = arith.addf %11, %13 : vector<304x128xf32>
    %c0_11 = arith.constant 0 : index
    %c0_12 = arith.constant 0 : index
    %15 = vector.load %arg6[%c0_11, %c0_12] : memref<304x128xf32, #tpu.memory_space<vmem>>, vector<304x128xf32>
    tpu.vector_store %arg6[%c0_11, %c0_12], %14 {strides = array<i32>} : memref<304x128xf32, #tpu.memory_space<vmem>>, vector<304x128xf32>,
    return
  }
  func.func @transform_0(%arg0: i32) -> (i32, i32) {
    %c0_i32 = arith.constant 0 : i32
    %c0_i32_0 = arith.constant 0 : i32
    return %arg0, %c0_i32 : i32, i32
  }
  func.func @transform_1(%arg0: i32) -> (i32, i32) {
    %c0_i32 = arith.constant 0 : i32
    %c0_i32_0 = arith.constant 0 : i32
    %c0_i32_1 = arith.constant 0 : i32
    return %c0_i32, %c0_i32_0 : i32, i32
  }
  func.func @transform_2(%arg0: i32) -> (i32, i32) {
    %c0_i32 = arith.constant 0 : i32
    %c0_i32_0 = arith.constant 0 : i32
    %c0_i32_1 = arith.constant 0 : i32
    return %c0_i32, %c0_i32_0 : i32, i32
  }
  func.func @transform_3(%arg0: i32) -> (i32, i32) {
    %c0_i32 = arith.constant 0 : i32
    %c0_i32_0 = arith.constant 0 : i32
    %c0_i32_1 = arith.constant 0 : i32
    return %c0_i32, %c0_i32_0 : i32, i32
  }
  func.func @transform_4(%arg0: i32) -> (i32, i32) {
    %c0_i32 = arith.constant 0 : i32
    %c0_i32_0 = arith.constant 0 : i32
    %c0_i32_1 = arith.constant 0 : i32
    return %c0_i32, %c0_i32_0 : i32, i32
  }
  func.func @transform_5(%arg0: i32) -> (i32, i32) {
    %c0_i32 = arith.constant 0 : i32
    %c0_i32_0 = arith.constant 0 : i32
    return %arg0, %c0_i32 : i32, i32
  }
}

module attributes {stable_mosaic.version = 11 : i64} {
  func.func @_mlp_resident_kernel(%arg0: i32, %arg1: memref<304x96xf32, #tpu.memory_space<vmem>>, %arg2: memref<96x256xbf16, #tpu.memory_space<vmem>>, %arg3: memref<1x256xf32, #tpu.memory_space<vmem>>, %arg4: memref<256x128xbf16, #tpu.memory_space<vmem>>, %arg5: memref<1x128xf32, #tpu.memory_space<vmem>>, %arg6: memref<304x128xf32, #tpu.memory_space<vmem>>) attributes {dimension_semantics = [#tpu.dimension_semantics<parallel>], iteration_bounds = array<i64: 1>, scalar_prefetch = 0 : i64, scratch_operands = 0 : i64, tpu.core_type = #tpu.core_type<tc>, window_params = [{transform_indices = @transform_0, window_bounds = array<i64: 304, 96>}, {pipeline_mode = #tpu.pipeline_mode<synchronous>, transform_indices = @transform_1, window_bounds = array<i64: 96, 256>}, {pipeline_mode = #tpu.pipeline_mode<synchronous>, transform_indices = @transform_2, window_bounds = array<i64: 1, 256>}, {pipeline_mode = #tpu.pipeline_mode<synchronous>, transform_indices = @transform_3, window_bounds = array<i64: 256, 128>}, {pipeline_mode = #tpu.pipeline_mode<synchronous>, transform_indices = @transform_4, window_bounds = array<i64: 1, 128>}, {transform_indices = @transform_5, window_bounds = array<i64: 304, 128>}]} {
    %c0 = arith.constant 0 : index
    %c0_0 = arith.constant 0 : index
    %0 = vector.load %arg1[%c0, %c0_0] : memref<304x96xf32, #tpu.memory_space<vmem>>, vector<304x96xf32>
    %1 = arith.truncf %0 : vector<304x96xf32> to vector<304x96xbf16>
    %c0_1 = arith.constant 0 : index
    %c0_2 = arith.constant 0 : index
    %2 = vector.load %arg2[%c0_1, %c0_2] : memref<96x256xbf16, #tpu.memory_space<vmem>>, vector<96x256xbf16>
    %cst = arith.constant dense<0.000000e+00> : vector<304x256xf32>
    %3 = tpu.matmul %1, %2, %cst {dimension_numbers = #tpu.dot_dimension_numbers<[1], [0], [0], [1], [0, 0, 1, 1], [], []>} : vector<304x96xbf16>, vector<96x256xbf16>, vector<304x256xf32> -> vector<304x256xf32>
    %c0_3 = arith.constant 0 : index
    %c0_4 = arith.constant 0 : index
    %4 = vector.load %arg3[%c0_3, %c0_4] : memref<1x256xf32, #tpu.memory_space<vmem>>, vector<1x256xf32>
    %5 = vector.broadcast %4 : vector<1x256xf32> to vector<304x256xf32>
    %6 = arith.addf %3, %5 : vector<304x256xf32>
    %cst_5 = arith.constant 0.000000e+00 : f32
    %7 = vector.broadcast %cst_5 : f32 to vector<304x256xf32>
    %8 = arith.maximumf %6, %7 : vector<304x256xf32>
    %9 = arith.truncf %8 : vector<304x256xf32> to vector<304x256xbf16>
    %c0_6 = arith.constant 0 : index
    %c0_7 = arith.constant 0 : index
    %10 = vector.load %arg4[%c0_6, %c0_7] : memref<256x128xbf16, #tpu.memory_space<vmem>>, vector<256x128xbf16>
    %cst_8 = arith.constant dense<0.000000e+00> : vector<304x128xf32>
    %11 = tpu.matmul %9, %10, %cst_8 {dimension_numbers = #tpu.dot_dimension_numbers<[1], [0], [0], [1], [0, 0, 1, 1], [], []>} : vector<304x256xbf16>, vector<256x128xbf16>, vector<304x128xf32> -> vector<304x128xf32>
    %c0_9 = arith.constant 0 : index
    %c0_10 = arith.constant 0 : index
    %12 = vector.load %arg5[%c0_9, %c0_10] : memref<1x128xf32, #tpu.memory_space<vmem>>, vector<1x128xf32>
    %13 = vector.broadcast %12 : vector<1x128xf32> to vector<304x128xf32>
    %14 = arith.addf %11, %13 : vector<304x128xf32>
    %c0_11 = arith.constant 0 : index
    %c0_12 = arith.constant 0 : index
    %15 = vector.load %arg6[%c0_11, %c0_12] : memref<304x128xf32, #tpu.memory_space<vmem>>, vector<304x128xf32>
    tpu.vector_store %arg6[%c0_11, %c0_12], %14 {strides = array<i32>} : memref<304x128xf32, #tpu.memory_space<vmem>>, vector<304x128xf32>,
    return
  }
  func.func @transform_0(%arg0: i32) -> (i32, i32) {
    %c0_i32 = arith.constant 0 : i32
    %c0_i32_0 = arith.constant 0 : i32
    return %arg0, %c0_i32 : i32, i32
  }
  func.func @transform_1(%arg0: i32) -> (i32, i32) {
    %c0_i32 = arith.constant 0 : i32
    %c0_i32_0 = arith.constant 0 : i32
    %c0_i32_1 = arith.constant 0 : i32
    return %c0_i32, %c0_i32_0 : i32, i32
  }
  func.func @transform_2(%arg0: i32) -> (i32, i32) {
    %c0_i32 = arith.constant 0 : i32
    %c0_i32_0 = arith.constant 0 : i32
    %c0_i32_1 = arith.constant 0 : i32
    return %c0_i32, %c0_i32_0 : i32, i32
  }
  func.func @transform_3(%arg0: i32) -> (i32, i32) {
    %c0_i32 = arith.constant 0 : i32
    %c0_i32_0 = arith.constant 0 : i32
    %c0_i32_1 = arith.constant 0 : i32
    return %c0_i32, %c0_i32_0 : i32, i32
  }
  func.func @transform_4(%arg0: i32) -> (i32, i32) {
    %c0_i32 = arith.constant 0 : i32
    %c0_i32_0 = arith.constant 0 : i32
    %c0_i32_1 = arith.constant 0 : i32
    return %c0_i32, %c0_i32_0 : i32, i32
  }
  func.func @transform_5(%arg0: i32) -> (i32, i32) {
    %c0_i32 = arith.constant 0 : i32
    %c0_i32_0 = arith.constant 0 : i32
    return %arg0, %c0_i32 : i32, i32
  }
}

</mosaic_0001>

<llo_original>
// kernel: tpu_custom_call.1
$region0: #{tpu_custom_call.1}
  #allocation0 [shape = 'u32[]', space=smem, size = 0x4, offset = 0x4, fixed_abs, tag = 'smem constant byte address 0x4 - core index']
  #allocation1 [shape = 'u32[144,128]{1,0:T(1,128)}', space=vmem, size = 0x12000, scoped, tag = 'internal scratch']
  %s0 = inlined_call_operand.vmem [shape: f32[304,96], index: 0, kind: input, shape index: {}]
  %s1 = inlined_call_operand.vmem [shape: bf16[96,256], index: 1, kind: input, shape index: {}]
  %s2 = inlined_call_operand.vmem [shape: f32[1,256], index: 2, kind: input, shape index: {}]
  %s3 = inlined_call_operand.vmem [shape: bf16[256,128], index: 3, kind: input, shape index: {}]
  %s4 = inlined_call_operand.vmem [shape: f32[1,128], index: 4, kind: input, shape index: {}]
  %s5 = inlined_call_operand.hbm [shape: f32[304,128], index: 5, kind: output, shape index: {}]
  %s6 = sld [smem:[#allocation0]]
  $region30: #{tpu_custom_call.1} parent=0
    _
  %s8 = ssub.s32 1, %s6
  %s9 = scalar_select 0, %s8, %s6
  $region1: #{tpu_custom_call.1} parent=0
    #allocation2 [shape = 'u8[155648]{0}', space=vmem, size = 0x26000, scoped, tag = 'output window, operand 0, single buffered']
    #allocation3 [shape = 's32[1]{0}', space=sflag, size = 0x4, scoped, tag = 'scoped memory for tpu_custom_call.1']
    %10 = vsyncpa [#allocation3], 0
    // Predicated region
    $region2: #{tpu_custom_call.1} parent=1 // pred_check
      _
    $region3: #{tpu_custom_call.1} parent=1 // pred_check_branch
      %12 = sbr.rel (0) target = $region5
    $region4: #{tpu_custom_call.1} parent=1 // pred_region
      _
    $region5: #{tpu_custom_call.1} parent=1 // pred_fallthru
      _
    // Predicated region
    $region6: #{tpu_custom_call.1} parent=1 // pred_check
      _
    $region7: #{tpu_custom_call.1} parent=1 // pred_check_branch
      %14 = sbr.rel (0) target = $region9
    $region8: #{tpu_custom_call.1} parent=1 // pred_region
      _
    $region9: #{tpu_custom_call.1} parent=1 // pred_fallthru
      _
    // Predicated region
    $region10: #{tpu_custom_call.1} parent=1 // pred_check
      _
    $region11: #{tpu_custom_call.1} parent=1 // pred_check_branch
      %16 = sbr.rel (0) target = $region13
    $region12: #{tpu_custom_call.1} parent=1 // pred_region
      _
    $region13: #{tpu_custom_call.1} parent=1 // pred_fallthru
      _
    // Predicated region
    $region14: #{tpu_custom_call.1} parent=1 // pred_check
      _
    $region15: #{tpu_custom_call.1} parent=1 // pred_check_branch
      %18 = sbr.rel (0) target = $region17
    $region16: #{tpu_custom_call.1} parent=1 // pred_region
      _
    $region17: #{tpu_custom_call.1} parent=1 // pred_fallthru
      _
    // Predicated region
    $region18: #{tpu_custom_call.1} parent=1 // pred_check
      _
    $region19: #{tpu_custom_call.1} parent=1 // pred_check_branch
      %20 = sbr.rel (0) target = $region21
    $region20: #{tpu_custom_call.1} parent=1 // pred_region
      _
    $region21: #{tpu_custom_call.1} parent=1 // pred_fallthru
      _
    %v22 = vld [vmem:[%s0] sm:$0xff]
    %v23 = vld [vmem:[%s0 + $0x8] sm:$0xff]
    %v24 = vld [vmem:[%s0 + $0x10] sm:$0xff]
    %v25 = vld [vmem:[%s0 + $0x18] sm:$0xff]
    %v26 = vld [vmem:[%s0 + $0x20] sm:$0xff]
    %v27 = vld [vmem:[%s0 + $0x28] sm:$0xff]
    %v28 = vld [vmem:[%s0 + $0x30] sm:$0xff]
    %v29 = vld [vmem:[%s0 + $0x38] sm:$0xff]
    %v30 = vld [vmem:[%s0 + $0x40] sm:$0xff]
    %v31 = vld [vmem:[%s0 + $0x48] sm:$0xff]
    %v32 = vld [vmem:[%s0 + $0x50] sm:$0xff]
    %v33 = vld [vmem:[%s0 + $0x58] sm:$0xff]
    %v34 = vld [vmem:[%s0 + $0x60] sm:$0xff]
    %v35 = vld [vmem:[%s0 + $0x68] sm:$0xff]
    %v36 = vld [vmem:[%s0 + $0x70] sm:$0xff]
    %v37 = vld [vmem:[%s0 + $0x78] sm:$0xff]
    %v38 = vld [vmem:[%s0 + $0x80] sm:$0xff]
    %v39 = vld [vmem:[%s0 + $0x88] sm:$0xff]
    %v40 = vld [vmem:[%s0 + $0x90] sm:$0xff]
    %v41 = vld [vmem:[%s0 + $0x98] sm:$0xff]
    %v42 = vld [vmem:[%s0 + $0xa0] sm:$0xff]
    %v43 = vld [vmem:[%s0 + $0xa8] sm:$0xff]
    %v44 = vld [vmem:[%s0 + $0xb0] sm:$0xff]
    %v45 = vld [vmem:[%s0 + $0xb8] sm:$0xff]
    %v46 = vld [vmem:[%s0 + $0xc0] sm:$0xff]
    %v47 = vld [vmem:[%s0 + $0xc8] sm:$0xff]
    %v48 = vld [vmem:[%s0 + $0xd0] sm:$0xff]
    %v49 = vld [vmem:[%s0 + $0xd8] sm:$0xff]
    %v50 = vld [vmem:[%s0 + $0xe0] sm:$0xff]
    %v51 = vld [vmem:[%s0 + $0xe8] sm:$0xff]
    %v52 = vld [vmem:[%s0 + $0xf0] sm:$0xff]
    %v53 = vld [vmem:[%s0 + $0xf8] sm:$0xff]
    %v54 = vld [vmem:[%s0 + $0x100] sm:$0xff]
    %v55 = vld [vmem:[%s0 + $0x108] sm:$0xff]
    %v56 = vld [vmem:[%s0 + $0x110] sm:$0xff]
    %v57 = vld [vmem:[%s0 + $0x118] sm:$0xff]
    %v58 = vld [vmem:[%s0 + $0x120] sm:$0xff]
    %v59 = vld [vmem:[%s0 + $0x128] sm:$0xff]
    %v60 = vpack.c.bf16 %v23, %v22
    %v61 = vpack.c.bf16 %v25, %v24
    %v62 = vpack.c.bf16 %v27, %v26
    %v63 = vpack.c.bf16 %v29, %v28
    %v64 = vpack.c.bf16 %v31, %v30
    %v65 = vpack.c.bf16 %v33, %v32
    %v66 = vpack.c.bf16 %v35, %v34
    %v67 = vpack.c.bf16 %v37, %v36
    %v68 = vpack.c.bf16 %v39, %v38
    %v69 = vpack.c.bf16 %v41, %v40
    %v70 = vpack.c.bf16 %v43, %v42
    %v71 = vpack.c.bf16 %v45, %v44
    %v72 = vpack.c.bf16 %v47, %v46
    %v73 = vpack.c.bf16 %v49, %v48
    %v74 = vpack.c.bf16 %v51, %v50
    %v75 = vpack.c.bf16 %v53, %v52
    %v76 = vpack.c.bf16 %v55, %v54
    %v77 = vpack.c.bf16 %v57, %v56
    %v78 = vpack.c.bf16 %v59, %v58
    %v79 = vld [vmem:[%s1] sm:$0xff]
    %v80 = vld [vmem:[%s1 + $0x8] sm:$0xff]
    %v81 = vld [vmem:[%s1 + $0x10] sm:$0xff]
    %v82 = vld [vmem:[%s1 + $0x18] sm:$0xff]
    %v83 = vld [vmem:[%s1 + $0x20] sm:$0xff]
    %v84 = vld [vmem:[%s1 + $0x28] sm:$0xff]
    %v85 = vld [vmem:[%s1 + $0x30] sm:$0xff]
    %v86 = vld [vmem:[%s1 + $0x38] sm:$0xff]
    %v87 = vld [vmem:[%s1 + $0x40] sm:$0xff]
    %v88 = vld [vmem:[%s1 + $0x48] sm:$0xff]
    %v89 = vld [vmem:[%s1 + $0x50] sm:$0xff]
    %v90 = vld [vmem:[%s1 + $0x58] sm:$0xff]
    %v91 = vld [vmem:[%s2] sm:$0x3]
    %v93 = vlaneseq
    %v94 = vshrl.u32 %v93, 7
    %v95 = vsub.s32 0, %v94
    %v96 = vrot.slane %v91, %v95
    %v97 = vlaneseq
    %v98 = vshrl.u32 %v97, 7
    %v99 = vsub.s32 1, %v98
    %v100 = vrot.slane %v91, %v99
    %v115 = vunpack.c.l.b16 %v79
    %v116 = vunpack.c.h.b16 %v79
    %v117 = vunpack.c.l.b16 %v80
    %v118 = vunpack.c.h.b16 %v80
    %v119 = vunpack.c.l.b16 %v81
    %v120 = vunpack.c.h.b16 %v81
    %v121 = vunpack.c.l.b16 %v82
    %v122 = vunpack.c.h.b16 %v82
    %v123 = vunpack.c.l.b16 %v83
    %v124 = vunpack.c.h.b16 %v83
    %v125 = vunpack.c.l.b16 %v84
    %v126 = vunpack.c.h.b16 %v84
    %v127 = vunpack.c.l.b16 %v85
    %v128 = vunpack.c.h.b16 %v85
    %v129 = vunpack.c.l.b16 %v86
    %v130 = vunpack.c.h.b16 %v86
    %v131 = vunpack.c.l.b16 %v87
    %v132 = vunpack.c.h.b16 %v87
    %v133 = vunpack.c.l.b16 %v88
    %v134 = vunpack.c.h.b16 %v88
    %v135 = vunpack.c.l.b16 %v89
    %v136 = vunpack.c.h.b16 %v89
    %v137 = vunpack.c.l.b16 %v90
    %v138 = vunpack.c.h.b16 %v90
    %v139 = vpack.c.b16 %v117, %v115
    %v140 = vpack.c.b16 %v118, %v116
    %v141 = vpack.c.b16 %v121, %v119
    %v142 = vpack.c.b16 %v122, %v120
    %v143 = vpack.c.b16 %v125, %v123
    %v144 = vpack.c.b16 %v126, %v124
    %v145 = vpack.c.b16 %v129, %v127
    %v146 = vpack.c.b16 %v130, %v128
    %v147 = vpack.c.b16 %v133, %v131
    %v148 = vpack.c.b16 %v134, %v132
    %v149 = vpack.c.b16 %v137, %v135
    %v150 = vpack.c.b16 %v138, %v136
    %vm163 = vcmask 785408
    %v165 = vsel %vm163, %v60, 0
    %v168 = vsel %vm163, %v61, 0
    %v171 = vsel %vm163, %v62, 0
    %v174 = vsel %vm163, %v63, 0
    %v177 = vsel %vm163, %v64, 0
    %v180 = vsel %vm163, %v65, 0
    %v183 = vsel %vm163, %v66, 0
    %v186 = vsel %vm163, %v67, 0
    %v189 = vsel %vm163, %v68, 0
    %v192 = vsel %vm163, %v69, 0
    %v195 = vsel %vm163, %v70, 0
    %v198 = vsel %vm163, %v71, 0
    %v201 = vsel %vm163, %v72, 0
    %v204 = vsel %vm163, %v73, 0
    %v207 = vsel %vm163, %v74, 0
    %v210 = vsel %vm163, %v75, 0
    %v213 = vsel %vm163, %v76, 0
    %v216 = vsel %vm163, %v77, 0
    %v219 = vsel %vm163, %v78, 0
    %221 = vmatprep.subr.bf16.mxu0 %v140
    %222 = vmatpush1.bf16.msra.mxu0 %v139
    %223 = vmatprep.subr.bf16.mxu0 %v142
    %224 = vmatpush1.bf16.msra.mxu0 %v141
    %225 = vmatprep.subr.bf16.mxu0 %v144
    %226 = vmatpush1.bf16.msra.mxu0 %v143
    %227 = vmatprep.subr.bf16.mxu0 %v146
    %228 = vmatpush1.bf16.msra.mxu0 %v145
    %229 = vmatprep.subr.bf16.mxu0 %v148
    %230 = vmatpush1.bf16.msra.mxu0 %v147
    %231 = vmatprep.subr.bf16.mxu0 %v150
    %232 = vmatpush1.bf16.msra.mxu0 %v149
    %233 = vmatprep.subr.bf16.mxu0 0
    %234 = vmatpush1.bf16.msra.mxu0 0
    %235 = vmatprep.subr.bf16.mxu0 0
    %236 = vmatpush1.bf16.msra.mxu0 0
    %237 = vmatprep.subr.bf16.mxu0 0
    %238 = vmatpush1.bf16.msra.mxu0 0
    %239 = vmatprep.subr.bf16.mxu0 0
    %240 = vmatpush1.bf16.msra.mxu0 0
    %241 = vmatprep.subr.bf16.mxu0 0
    %242 = vmatpush1.bf16.msra.mxu0 0
    %243 = vmatprep.subr.bf16.mxu0 0
    %244 = vmatpush1.bf16.msra.mxu0 0
    %245 = vmatprep.subr.bf16.mxu0 0
    %246 = vmatpush1.bf16.msra.mxu0 0
    %247 = vmatprep.subr.bf16.mxu0 0
    %248 = vmatpush1.bf16.msra.mxu0 0
    %249 = vmatprep.subr.bf16.mxu0 0
    %250 = vmatpush1.bf16.msra.mxu0 0
    %251 = vmatprep.subr.bf16.mxu0 0
    %252 = vmatpush1.bf16.msra.mxu0 0
    %253 = vmatprep.mubr.bf16.mxu0 0
    %254 = vmatmul.mubr.bf16.gmra.mrb[0].mxu0 %v165
    %v255 = vpop.f32.mrb[0].mxu0
    %v256 = vadd.f32 %v96, %v255
    %v257 = vpop.f32.mrb[0].mxu0
    %v258 = vadd.f32 %v100, %v257
    %v259 = vpop.f32.mrb[0].mxu0
    %v260 = vadd.f32 %v96, %v259
    %v261 = vpop.f32.mrb[0].mxu0
    %v262 = vadd.f32 %v100, %v261
    %263 = vmatprep.mubr.bf16.mxu0 0
    %264 = vmatmul.mubr.bf16.gmra.mrb[0].mxu0 %v168
    %v265 = vpop.f32.mrb[0].mxu0
    %v266 = vadd.f32 %v96, %v265
    %v267 = vpop.f32.mrb[0].mxu0
    %v268 = vadd.f32 %v100, %v267
    %v269 = vpop.f32.mrb[0].mxu0
    %v270 = vadd.f32 %v96, %v269
    %v271 = vpop.f32.mrb[0].mxu0
    %v272 = vadd.f32 %v100, %v271
    %273 = vmatprep.mubr.bf16.mxu0 0
    %274 = vmatmul.mubr.bf16.gmra.mrb[0].mxu0 %v171
    %v275 = vpop.f32.mrb[0].mxu0
    %v276 = vadd.f32 %v96, %v275
    %v277 = vpop.f32.mrb[0].mxu0
    %v278 = vadd.f32 %v100, %v277
    %v279 = vpop.f32.mrb[0].mxu0
    %v280 = vadd.f32 %v96, %v279
    %v281 = vpop.f32.mrb[0].mxu0
    %v282 = vadd.f32 %v100, %v281
    %283 = vmatprep.mubr.bf16.mxu0 0
    %284 = vmatmul.mubr.bf16.gmra.mrb[0].mxu0 %v174
    %v285 = vpop.f32.mrb[0].mxu0
    %v286 = vadd.f32 %v96, %v285
    %v287 = vpop.f32.mrb[0].mxu0
    %v288 = vadd.f32 %v100, %v287
    %v289 = vpop.f32.mrb[0].mxu0
    %v290 = vadd.f32 %v96, %v289
    %v291 = vpop.f32.mrb[0].mxu0
    %v292 = vadd.f32 %v100, %v291
    %293 = vmatprep.mubr.bf16.mxu0 0
    %294 = vmatmul.mubr.bf16.gmra.mrb[0].mxu0 %v177
    %v295 = vpop.f32.mrb[0].mxu0
    %v296 = vadd.f32 %v96, %v295
    %v297 = vpop.f32.mrb[0].mxu0
    %v298 = vadd.f32 %v100, %v297
    %v299 = vpop.f32.mrb[0].mxu0
    %v300 = vadd.f32 %v96, %v299
    %v301 = vpop.f32.mrb[0].mxu0
    %v302 = vadd.f32 %v100, %v301
    %303 = vmatprep.mubr.bf16.mxu0 0
    %304 = vmatmul.mubr.bf16.gmra.mrb[0].mxu0 %v180
    %v305 = vpop.f32.mrb[0].mxu0
    %v306 = vadd.f32 %v96, %v305
    %v307 = vpop.f32.mrb[0].mxu0
    %v308 = vadd.f32 %v100, %v307
    %v309 = vpop.f32.mrb[0].mxu0
    %v310 = vadd.f32 %v96, %v309
    %v311 = vpop.f32.mrb[0].mxu0
    %v312 = vadd.f32 %v100, %v311
    %313 = vmatprep.mubr.bf16.mxu0 0
    %314 = vmatmul.mubr.bf16.gmra.mrb[0].mxu0 %v183
    %v315 = vpop.f32.mrb[0].mxu0
    %v316 = vadd.f32 %v96, %v315
    %v317 = vpop.f32.mrb[0].mxu0
    %v318 = vadd.f32 %v100, %v317
    %v319 = vpop.f32.mrb[0].mxu0
    %v320 = vadd.f32 %v96, %v319
    %v321 = vpop.f32.mrb[0].mxu0
    %v322 = vadd.f32 %v100, %v321
    %323 = vmatprep.mubr.bf16.mxu0 0
    %324 = vmatmul.mubr.bf16.gmra.mrb[0].mxu0 %v186
    %v325 = vpop.f32.mrb[0].mxu0
    %v326 = vadd.f32 %v96, %v325
    %v327 = vpop.f32.mrb[0].mxu0
    %v328 = vadd.f32 %v100, %v327
    %v329 = vpop.f32.mrb[0].mxu0
    %v330 = vadd.f32 %v96, %v329
    %v331 = vpop.f32.mrb[0].mxu0
    %v332 = vadd.f32 %v100, %v331
    %333 = vmatprep.mubr.bf16.mxu0 0
    %334 = vmatmul.mubr.bf16.gmra.mrb[0].mxu0 %v189
    %v335 = vpop.f32.mrb[0].mxu0
    %v336 = vadd.f32 %v96, %v335
    %v337 = vpop.f32.mrb[0].mxu0
    %v338 = vadd.f32 %v100, %v337
    %v339 = vpop.f32.mrb[0].mxu0
    %v340 = vadd.f32 %v96, %v339
    %v341 = vpop.f32.mrb[0].mxu0
    %v342 = vadd.f32 %v100, %v341
    %343 = vmatprep.mubr.bf16.mxu0 0
    %344 = vmatmul.mubr.bf16.gmra.mrb[0].mxu0 %v192
    %v345 = vpop.f32.mrb[0].mxu0
    %v346 = vadd.f32 %v96, %v345
    %v347 = vpop.f32.mrb[0].mxu0
    %v348 = vadd.f32 %v100, %v347
    %v349 = vpop.f32.mrb[0].mxu0
    %v350 = vadd.f32 %v96, %v349
    %v351 = vpop.f32.mrb[0].mxu0
    %v352 = vadd.f32 %v100, %v351
    %353 = vmatprep.mubr.bf16.mxu0 0
    %354 = vmatmul.mubr.bf16.gmra.mrb[0].mxu0 %v195
    %v355 = vpop.f32.mrb[0].mxu0
    %v356 = vadd.f32 %v96, %v355
    %v357 = vpop.f32.mrb[0].mxu0
    %v358 = vadd.f32 %v100, %v357
    %v359 = vpop.f32.mrb[0].mxu0
    %v360 = vadd.f32 %v96, %v359
    %v361 = vpop.f32.mrb[0].mxu0
    %v362 = vadd.f32 %v100, %v361
    %363 = vmatprep.mubr.bf16.mxu0 0
    %364 = vmatmul.mubr.bf16.gmra.mrb[0].mxu0 %v198
    %v365 = vpop.f32.mrb[0].mxu0
    %v366 = vadd.f32 %v96, %v365
    %v367 = vpop.f32.mrb[0].mxu0
    %v368 = vadd.f32 %v100, %v367
    %v369 = vpop.f32.mrb[0].mxu0
    %v370 = vadd.f32 %v96, %v369
    %v371 = vpop.f32.mrb[0].mxu0
    %v372 = vadd.f32 %v100, %v371
    %373 = vmatprep.mubr.bf16.mxu0 0
    %374 = vmatmul.mubr.bf16.gmra.mrb[0].mxu0 %v201
    %v375 = vpop.f32.mrb[0].mxu0
    %v376 = vadd.f32 %v96, %v375
    %v377 = vpop.f32.mrb[0].mxu0
    %v378 = vadd.f32 %v100, %v377
    %v379 = vpop.f32.mrb[0].mxu0
    %v380 = vadd.f32 %v96, %v379
    %v381 = vpop.f32.mrb[0].mxu0
    %v382 = vadd.f32 %v100, %v381
    %383 = vmatprep.mubr.bf16.mxu0 0
    %384 = vmatmul.mubr.bf16.gmra.mrb[0].mxu0 %v204
    %v385 = vpop.f32.mrb[0].mxu0
    %v386 = vadd.f32 %v96, %v385
    %v387 = vpop.f32.mrb[0].mxu0
    %v388 = vadd.f32 %v100, %v387
    %v389 = vpop.f32.mrb[0].mxu0
    %v390 = vadd.f32 %v96, %v389
    %v391 = vpop.f32.mrb[0].mxu0
    %v392 = vadd.f32 %v100, %v391
    %393 = vmatprep.mubr.bf16.mxu0 0
    %394 = vmatmul.mubr.bf16.gmra.mrb[0].mxu0 %v207
    %v395 = vpop.f32.mrb[0].mxu0
    %v396 = vadd.f32 %v96, %v395
    %v397 = vpop.f32.mrb[0].mxu0
    %v398 = vadd.f32 %v100, %v397
    %v399 = vpop.f32.mrb[0].mxu0
    %v400 = vadd.f32 %v96, %v399
    %v401 = vpop.f32.mrb[0].mxu0
    %v402 = vadd.f32 %v100, %v401
    %403 = vmatprep.mubr.bf16.mxu0 0
    %404 = vmatmul.mubr.bf16.gmra.mrb[0].mxu0 %v210
    %v405 = vpop.f32.mrb[0].mxu0
    %v406 = vadd.f32 %v96, %v405
    %v407 = vpop.f32.mrb[0].mxu0
    %v408 = vadd.f32 %v100, %v407
    %v409 = vpop.f32.mrb[0].mxu0
    %v410 = vadd.f32 %v96, %v409
    %v411 = vpop.f32.mrb[0].mxu0
    %v412 = vadd.f32 %v100, %v411
    %413 = vmatprep.mubr.bf16.mxu0 0
    %414 = vmatmul.mubr.bf16.gmra.mrb[0].mxu0 %v213
    %v415 = vpop.f32.mrb[0].mxu0
    %v416 = vadd.f32 %v96, %v415
    %v417 = vpop.f32.mrb[0].mxu0
    %v418 = vadd.f32 %v100, %v417
    %v419 = vpop.f32.mrb[0].mxu0
    %v420 = vadd.f32 %v96, %v419
    %v421 = vpop.f32.mrb[0].mxu0
    %v422 = vadd.f32 %v100, %v421
    %423 = vmatprep.mubr.bf16.mxu0 0
    %424 = vmatmul.mubr.bf16.gmra.mrb[0].mxu0 %v216
    %v425 = vpop.f32.mrb[0].mxu0
    %v426 = vadd.f32 %v96, %v425
    %v427 = vpop.f32.mrb[0].mxu0
    %v428 = vadd.f32 %v100, %v427
    %v429 = vpop.f32.mrb[0].mxu0
    %v430 = vadd.f32 %v96, %v429
    %v431 = vpop.f32.mrb[0].mxu0
    %v432 = vadd.f32 %v100, %v431
    %433 = vmatprep.mubr.bf16.mxu0 0
    %434 = vmatmul.mubr.bf16.gmra.mrb[0].mxu0 %v219
    %v435 = vpop.f32.mrb[0].mxu0
    %v436 = vadd.f32 %v96, %v435
    %v437 = vpop.f32.mrb[0].mxu0
    %v438 = vadd.f32 %v100, %v437
    %v439 = vpop.f32.mrb[0].mxu0
    %v440 = vadd.f32 %v96, %v439
    %v441 = vpop.f32.mrb[0].mxu0
    %v442 = vadd.f32 %v100, %v441
    %443 = vdwg.mxu0
    %v444 = vmax.f32 %v256, 0.0
    %v445 = vmax.f32 %v258, 0.0
    %v446 = vmax.f32 %v260, 0.0
    %v447 = vmax.f32 %v262, 0.0
    %v448 = vmax.f32 %v266, 0.0
    %v449 = vmax.f32 %v268, 0.0
    %v450 = vmax.f32 %v270, 0.0
    %v451 = vmax.f32 %v272, 0.0
    %v452 = vmax.f32 %v276, 0.0
    %v453 = vmax.f32 %v278, 0.0
    %v454 = vmax.f32 %v280, 0.0
    %v455 = vmax.f32 %v282, 0.0
    %v456 = vmax.f32 %v286, 0.0
    %v457 = vmax.f32 %v288, 0.0
    %v458 = vmax.f32 %v290, 0.0
    %v459 = vmax.f32 %v292, 0.0
    %v460 = vmax.f32 %v296, 0.0
    %v461 = vmax.f32 %v298, 0.0
    %v462 = vmax.f32 %v300, 0.0
    %v463 = vmax.f32 %v302, 0.0
    %v464 = vmax.f32 %v306, 0.0
    %v465 = vmax.f32 %v308, 0.0
    %v466 = vmax.f32 %v310, 0.0
    %v467 = vmax.f32 %v312, 0.0
    %v468 = vmax.f32 %v316, 0.0
    %v469 = vmax.f32 %v318, 0.0
    %v470 = vmax.f32 %v320, 0.0
    %v471 = vmax.f32 %v322, 0.0
    %v472 = vmax.f32 %v326, 0.0
    %v473 = vmax.f32 %v328, 0.0
    %v474 = vmax.f32 %v330, 0.0
    %v475 = vmax.f32 %v332, 0.0
    %v476 = vmax.f32 %v336, 0.0
    %v477 = vmax.f32 %v338, 0.0
    %v478 = vmax.f32 %v340, 0.0
    %v479 = vmax.f32 %v342, 0.0
    %v480 = vmax.f32 %v346, 0.0
    %v481 = vmax.f32 %v348, 0.0
    %v482 = vmax.f32 %v350, 0.0
    %v483 = vmax.f32 %v352, 0.0
    %v484 = vmax.f32 %v356, 0.0
    %v485 = vmax.f32 %v358, 0.0
    %v486 = vmax.f32 %v360, 0.0
    %v487 = vmax.f32 %v362, 0.0
    %v488 = vmax.f32 %v366, 0.0
    %v489 = vmax.f32 %v368, 0.0
    %v490 = vmax.f32 %v370, 0.0
    %v491 = vmax.f32 %v372, 0.0
    %v492 = vmax.f32 %v376, 0.0
    %v493 = vmax.f32 %v378, 0.0
    %v494 = vmax.f32 %v380, 0.0
    %v495 = vmax.f32 %v382, 0.0
    %v496 = vmax.f32 %v386, 0.0
    %v497 = vmax.f32 %v388, 0.0
    %v498 = vmax.f32 %v390, 0.0
    %v499 = vmax.f32 %v392, 0.0
    %v500 = vmax.f32 %v396, 0.0
    %v501 = vmax.f32 %v398, 0.0
    %v502 = vmax.f32 %v400, 0.0
    %v503 = vmax.f32 %v402, 0.0
    %v504 = vmax.f32 %v406, 0.0
    %v505 = vmax.f32 %v408, 0.0
    %v506 = vmax.f32 %v410, 0.0
    %v507 = vmax.f32 %v412, 0.0
    %v508 = vmax.f32 %v416, 0.0
    %v509 = vmax.f32 %v418, 0.0
    %v510 = vmax.f32 %v420, 0.0
    %v511 = vmax.f32 %v422, 0.0
    %v512 = vmax.f32 %v426, 0.0
    %v513 = vmax.f32 %v428, 0.0
    %v514 = vmax.f32 %v430, 0.0
    %v515 = vmax.f32 %v432, 0.0
    %v516 = vmax.f32 %v436, 0.0
    %v517 = vmax.f32 %v438, 0.0
    %v518 = vmax.f32 %v440, 0.0
    %v519 = vmax.f32 %v442, 0.0
    %v520 = vpack.c.bf16 %v446, %v444
    %v521 = vpack.c.bf16 %v447, %v445
    %v522 = vpack.c.bf16 %v450, %v448
    %v523 = vpack.c.bf16 %v451, %v449
    %v524 = vpack.c.bf16 %v454, %v452
    %v525 = vpack.c.bf16 %v455, %v453
    %v526 = vpack.c.bf16 %v458, %v456
    %v527 = vpack.c.bf16 %v459, %v457
    %v528 = vpack.c.bf16 %v462, %v460
    %v529 = vpack.c.bf16 %v463, %v461
    %v530 = vpack.c.bf16 %v466, %v464
    %v531 = vpack.c.bf16 %v467, %v465
    %v532 = vpack.c.bf16 %v470, %v468
    %v533 = vpack.c.bf16 %v471, %v469
    %v534 = vpack.c.bf16 %v474, %v472
    %v535 = vpack.c.bf16 %v475, %v473
    %v536 = vpack.c.bf16 %v478, %v476
    %v537 = vpack.c.bf16 %v479, %v477
    %v538 = vpack.c.bf16 %v482, %v480
    %v539 = vpack.c.bf16 %v483, %v481
    %v540 = vpack.c.bf16 %v486, %v484
    %v541 = vpack.c.bf16 %v487, %v485
    %v542 = vpack.c.bf16 %v490, %v488
    %v543 = vpack.c.bf16 %v491, %v489
    %v544 = vpack.c.bf16 %v494, %v492
    %v545 = vpack.c.bf16 %v495, %v493
    %v546 = vpack.c.bf16 %v498, %v496
    %v547 = vpack.c.bf16 %v499, %v497
    %v548 = vpack.c.bf16 %v502, %v500
    %v549 = vpack.c.bf16 %v503, %v501
    %v550 = vpack.c.bf16 %v506, %v504
    %v551 = vpack.c.bf16 %v507, %v505
    %v552 = vpack.c.bf16 %v510, %v508
    %v553 = vpack.c.bf16 %v511, %v509
    %v554 = vpack.c.bf16 %v514, %v512
    %v555 = vpack.c.bf16 %v515, %v513
    %v556 = vpack.c.bf16 %v518, %v516
    %v557 = vpack.c.bf16 %v519, %v517
    %v558 = vld [vmem:[%s3] sm:$0xf]
    %v559 = vld [vmem:[%s3 + $0x4] sm:$0xf]
    %v560 = vld [vmem:[%s3 + $0x8] sm:$0xf]
    %v561 = vld [vmem:[%s3 + $0xc] sm:$0xf]
    %v562 = vld [vmem:[%s3 + $0x10] sm:$0xf]
    %v563 = vld [vmem:[%s3 + $0x14] sm:$0xf]
    %v564 = vld [vmem:[%s3 + $0x18] sm:$0xf]
    %v565 = vld [vmem:[%s3 + $0x1c] sm:$0xf]
    %v566 = vld [vmem:[%s3 + $0x20] sm:$0xf]
    %v567 = vld [vmem:[%s3 + $0x24] sm:$0xf]
    %v568 = vld [vmem:[%s3 + $0x28] sm:$0xf]
    %v569 = vld [vmem:[%s3 + $0x2c] sm:$0xf]
    %v570 = vld [vmem:[%s3 + $0x30] sm:$0xf]
    %v571 = vld [vmem:[%s3 + $0x34] sm:$0xf]
    %v572 = vld [vmem:[%s3 + $0x38] sm:$0xf]
    %v573 = vld [vmem:[%s3 + $0x3c] sm:$0xf]
    %v574 = vld [vmem:[%s3 + $0x40] sm:$0xf]
    %v575 = vld [vmem:[%s3 + $0x44] sm:$0xf]
    %v576 = vld [vmem:[%s3 + $0x48] sm:$0xf]
    %v577 = vld [vmem:[%s3 + $0x4c] sm:$0xf]
    %v578 = vld [vmem:[%s3 + $0x50] sm:$0xf]
    %v579 = vld [vmem:[%s3 + $0x54] sm:$0xf]
    %v580 = vld [vmem:[%s3 + $0x58] sm:$0xf]
    %v581 = vld [vmem:[%s3 + $0x5c] sm:$0xf]
    %v582 = vld [vmem:[%s3 + $0x60] sm:$0xf]
    %v583 = vld [vmem:[%s3 + $0x64] sm:$0xf]
    %v584 = vld [vmem:[%s3 + $0x68] sm:$0xf]
    %v585 = vld [vmem:[%s3 + $0x6c] sm:$0xf]
    %v586 = vld [vmem:[%s3 + $0x70] sm:$0xf]
    %v587 = vld [vmem:[%s3 + $0x74] sm:$0xf]
    %v588 = vld [vmem:[%s3 + $0x78] sm:$0xf]
    %v589 = vld [vmem:[%s3 + $0x7c] sm:$0xf]
    %v590 = vld [vmem:[%s4] sm:$0x1]
    %v592 = vlaneseq
    %v593 = vshrl.u32 %v592, 7
    %v594 = vsub.s32 0, %v593
    %v595 = vrot.slane %v590, %v594
    %v629 = vunpack.c.l.b16 %v558
    %v630 = vunpack.c.l.b16 %v559
    %v631 = vunpack.c.l.b16 %v560
    %v632 = vunpack.c.l.b16 %v561
    %v633 = vunpack.c.l.b16 %v562
    %v634 = vunpack.c.l.b16 %v563
    %v635 = vunpack.c.l.b16 %v564
    %v636 = vunpack.c.l.b16 %v565
    %v637 = vunpack.c.l.b16 %v566
    %v638 = vunpack.c.l.b16 %v567
    %v639 = vunpack.c.l.b16 %v568
    %v640 = vunpack.c.l.b16 %v569
    %v641 = vunpack.c.l.b16 %v570
    %v642 = vunpack.c.l.b16 %v571
    %v643 = vunpack.c.l.b16 %v572
    %v644 = vunpack.c.l.b16 %v573
    %v645 = vunpack.c.l.b16 %v574
    %v646 = vunpack.c.l.b16 %v575
    %v647 = vunpack.c.l.b16 %v576
    %v648 = vunpack.c.l.b16 %v577
    %v649 = vunpack.c.l.b16 %v578
    %v650 = vunpack.c.l.b16 %v579
    %v651 = vunpack.c.l.b16 %v580
    %v652 = vunpack.c.l.b16 %v581
    %v653 = vunpack.c.l.b16 %v582
    %v654 = vunpack.c.l.b16 %v583
    %v655 = vunpack.c.l.b16 %v584
    %v656 = vunpack.c.l.b16 %v585
    %v657 = vunpack.c.l.b16 %v586
    %v658 = vunpack.c.l.b16 %v587
    %v659 = vunpack.c.l.b16 %v588
    %v660 = vunpack.c.l.b16 %v589
    %v661 = vpack.c.b16 %v630, %v629
    %v662 = vpack.c.b16 %v632, %v631
    %v663 = vpack.c.b16 %v634, %v633
    %v664 = vpack.c.b16 %v636, %v635
    %v665 = vpack.c.b16 %v638, %v637
    %v666 = vpack.c.b16 %v640, %v639
    %v667 = vpack.c.b16 %v642, %v641
    %v668 = vpack.c.b16 %v644, %v643
    %v669 = vpack.c.b16 %v646, %v645
    %v670 = vpack.c.b16 %v648, %v647
    %v671 = vpack.c.b16 %v650, %v649
    %v672 = vpack.c.b16 %v652, %v651
    %v673 = vpack.c.b16 %v654, %v653
    %v674 = vpack.c.b16 %v656, %v655
    %v675 = vpack.c.b16 %v658, %v657
    %v676 = vpack.c.b16 %v660, %v659
    %693 = vmatprep.subr.bf16.mxu0 0
    %694 = vmatpush1.bf16.msra.mxu0 %v661
    %695 = vmatprep.subr.bf16.mxu0 0
    %696 = vmatpush1.bf16.msra.mxu0 %v662
    %697 = vmatprep.subr.bf16.mxu0 0
    %698 = vmatpush1.bf16.msra.mxu0 %v663
    %699 = vmatprep.subr.bf16.mxu0 0
    %700 = vmatpush1.bf16.msra.mxu0 %v664
    %701 = vmatprep.subr.bf16.mxu0 0
    %702 = vmatpush1.bf16.msra.mxu0 %v665
    %703 = vmatprep.subr.bf16.mxu0 0
    %704 = vmatpush1.bf16.msra.mxu0 %v666
    %705 = vmatprep.subr.bf16.mxu0 0
    %706 = vmatpush1.bf16.msra.mxu0 %v667
    %707 = vmatprep.subr.bf16.mxu0 0
    %708 = vmatpush1.bf16.msra.mxu0 %v668
    %709 = vmatprep.subr.bf16.mxu0 0
    %710 = vmatpush1.bf16.msra.mxu0 %v669
    %711 = vmatprep.subr.bf16.mxu0 0
    %712 = vmatpush1.bf16.msra.mxu0 %v670
    %713 = vmatprep.subr.bf16.mxu0 0
    %714 = vmatpush1.bf16.msra.mxu0 %v671
    %715 = vmatprep.subr.bf16.mxu0 0
    %716 = vmatpush1.bf16.msra.mxu0 %v672
    %717 = vmatprep.subr.bf16.mxu0 0
    %718 = vmatpush1.bf16.msra.mxu0 %v673
    %719 = vmatprep.subr.bf16.mxu0 0
    %720 = vmatpush1.bf16.msra.mxu0 %v674
    %721 = vmatprep.subr.bf16.mxu0 0
    %722 = vmatpush1.bf16.msra.mxu0 %v675
    %723 = vmatprep.subr.bf16.mxu0 0
    %724 = vmatpush1.bf16.msra.mxu0 %v676
    %725 = vmatprep.mubr.bf16.mxu0 %v521
    %726 = vmatmul.mubr.bf16.gmra.mrb[0].mxu0 %v520
    %v727 = vpop.f32.mrb[0].mxu0
    %v728 = vadd.f32 %v595, %v727
    %v729 = vpop.f32.mrb[0].mxu0
    %v730 = vpop.f32.mrb[0].mxu0
    %v731 = vadd.f32 %v595, %v730
    %v732 = vpop.f32.mrb[0].mxu0
    %733 = vmatprep.mubr.bf16.mxu0 %v523
    %734 = vmatmul.mubr.bf16.gmra.mrb[0].mxu0 %v522
    %v735 = vpop.f32.mrb[0].mxu0
    %v736 = vadd.f32 %v595, %v735
    %v737 = vpop.f32.mrb[0].mxu0
    %v738 = vpop.f32.mrb[0].mxu0
    %v739 = vadd.f32 %v595, %v738
    %v740 = vpop.f32.mrb[0].mxu0
    %741 = vmatprep.mubr.bf16.mxu0 %v525
    %742 = vmatmul.mubr.bf16.gmra.mrb[0].mxu0 %v524
    %v743 = vpop.f32.mrb[0].mxu0
    %v744 = vadd.f32 %v595, %v743
    %v745 = vpop.f32.mrb[0].mxu0
    %v746 = vpop.f32.mrb[0].mxu0
    %v747 = vadd.f32 %v595, %v746
    %v748 = vpop.f32.mrb[0].mxu0
    %749 = vmatprep.mubr.bf16.mxu0 %v527
    %750 = vmatmul.mubr.bf16.gmra.mrb[0].mxu0 %v526
    %v751 = vpop.f32.mrb[0].mxu0
    %v752 = vadd.f32 %v595, %v751
    %v753 = vpop.f32.mrb[0].mxu0
    %v754 = vpop.f32.mrb[0].mxu0
    %v755 = vadd.f32 %v595, %v754
    %v756 = vpop.f32.mrb[0].mxu0
    %757 = vmatprep.mubr.bf16.mxu0 %v529
    %758 = vmatmul.mubr.bf16.gmra.mrb[0].mxu0 %v528
    %v759 = vpop.f32.mrb[0].mxu0
    %v760 = vadd.f32 %v595, %v759
    %v761 = vpop.f32.mrb[0].mxu0
    %v762 = vpop.f32.mrb[0].mxu0
    %v763 = vadd.f32 %v595, %v762
    %v764 = vpop.f32.mrb[0].mxu0
    %765 = vmatprep.mubr.bf16.mxu0 %v531
    %766 = vmatmul.mubr.bf16.gmra.mrb[0].mxu0 %v530
    %v767 = vpop.f32.mrb[0].mxu0
    %v768 = vadd.f32 %v595, %v767
    %v769 = vpop.f32.mrb[0].mxu0
    %v770 = vpop.f32.mrb[0].mxu0
    %v771 = vadd.f32 %v595, %v770
    %v772 = vpop.f32.mrb[0].mxu0
    %773 = vmatprep.mubr.bf16.mxu0 %v533
    %774 = vmatmul.mubr.bf16.gmra.mrb[0].mxu0 %v532
    %v775 = vpop.f32.mrb[0].mxu0
    %v776 = vadd.f32 %v595, %v775
    %v777 = vpop.f32.mrb[0].mxu0
    %v778 = vpop.f32.mrb[0].mxu0
    %v779 = vadd.f32 %v595, %v778
    %v780 = vpop.f32.mrb[0].mxu0
    %781 = vmatprep.mubr.bf16.mxu0 %v535
    %782 = vmatmul.mubr.bf16.gmra.mrb[0].mxu0 %v534
    %v783 = vpop.f32.mrb[0].mxu0
    %v784 = vadd.f32 %v595, %v783
    %v785 = vpop.f32.mrb[0].mxu0
    %v786 = vpop.f32.mrb[0].mxu0
    %v787 = vadd.f32 %v595, %v786
    %v788 = vpop.f32.mrb[0].mxu0
    %789 = vmatprep.mubr.bf16.mxu0 %v537
    %790 = vmatmul.mubr.bf16.gmra.mrb[0].mxu0 %v536
    %v791 = vpop.f32.mrb[0].mxu0
    %v792 = vadd.f32 %v595, %v791
    %v793 = vpop.f32.mrb[0].mxu0
    %v794 = vpop.f32.mrb[0].mxu0
    %v795 = vadd.f32 %v595, %v794
    %v796 = vpop.f32.mrb[0].mxu0
    %797 = vmatprep.mubr.bf16.mxu0 %v539
    %798 = vmatmul.mubr.bf16.gmra.mrb[0].mxu0 %v538
    %v799 = vpop.f32.mrb[0].mxu0
    %v800 = vadd.f32 %v595, %v799
    %v801 = vpop.f32.mrb[0].mxu0
    %v802 = vpop.f32.mrb[0].mxu0
    %v803 = vadd.f32 %v595, %v802
    %v804 = vpop.f32.mrb[0].mxu0
    %805 = vmatprep.mubr.bf16.mxu0 %v541
    %806 = vmatmul.mubr.bf16.gmra.mrb[0].mxu0 %v540
    %v807 = vpop.f32.mrb[0].mxu0
    %v808 = vadd.f32 %v595, %v807
    %v809 = vpop.f32.mrb[0].mxu0
    %v810 = vpop.f32.mrb[0].mxu0
    %v811 = vadd.f32 %v595, %v810
    %v812 = vpop.f32.mrb[0].mxu0
    %813 = vmatprep.mubr.bf16.mxu0 %v543
    %814 = vmatmul.mubr.bf16.gmra.mrb[0].mxu0 %v542
    %v815 = vpop.f32.mrb[0].mxu0
    %v816 = vadd.f32 %v595, %v815
    %v817 = vpop.f32.mrb[0].mxu0
    %v818 = vpop.f32.mrb[0].mxu0
    %v819 = vadd.f32 %v595, %v818
    %v820 = vpop.f32.mrb[0].mxu0
    %821 = vmatprep.mubr.bf16.mxu0 %v545
    %822 = vmatmul.mubr.bf16.gmra.mrb[0].mxu0 %v544
    %v823 = vpop.f32.mrb[0].mxu0
    %v824 = vadd.f32 %v595, %v823
    %v825 = vpop.f32.mrb[0].mxu0
    %v826 = vpop.f32.mrb[0].mxu0
    %v827 = vadd.f32 %v595, %v826
    %v828 = vpop.f32.mrb[0].mxu0
    %829 = vmatprep.mubr.bf16.mxu0 %v547
    %830 = vmatmul.mubr.bf16.gmra.mrb[0].mxu0 %v546
    %v831 = vpop.f32.mrb[0].mxu0
    %v832 = vadd.f32 %v595, %v831
    %v833 = vpop.f32.mrb[0].mxu0
    %v834 = vpop.f32.mrb[0].mxu0
    %v835 = vadd.f32 %v595, %v834
    %v836 = vpop.f32.mrb[0].mxu0
    %837 = vmatprep.mubr.bf16.mxu0 %v549
    %838 = vmatmul.mubr.bf16.gmra.mrb[0].mxu0 %v548
    %v839 = vpop.f32.mrb[0].mxu0
    %v840 = vadd.f32 %v595, %v839
    %v841 = vpop.f32.mrb[0].mxu0
    %v842 = vpop.f32.mrb[0].mxu0
    %v843 = vadd.f32 %v595, %v842
    %v844 = vpop.f32.mrb[0].mxu0
    %845 = vmatprep.mubr.bf16.mxu0 %v551
    %846 = vmatmul.mubr.bf16.gmra.mrb[0].mxu0 %v550
    %v847 = vpop.f32.mrb[0].mxu0
    %v848 = vadd.f32 %v595, %v847
    %v849 = vpop.f32.mrb[0].mxu0
    %v850 = vpop.f32.mrb[0].mxu0
    %v851 = vadd.f32 %v595, %v850
    %v852 = vpop.f32.mrb[0].mxu0
    %853 = vmatprep.mubr.bf16.mxu0 %v553
    %854 = vmatmul.mubr.bf16.gmra.mrb[0].mxu0 %v552
    %v855 = vpop.f32.mrb[0].mxu0
    %v856 = vadd.f32 %v595, %v855
    %v857 = vpop.f32.mrb[0].mxu0
    %v858 = vpop.f32.mrb[0].mxu0
    %v859 = vadd.f32 %v595, %v858
    %v860 = vpop.f32.mrb[0].mxu0
    %861 = vmatprep.mubr.bf16.mxu0 %v555
    %862 = vmatmul.mubr.bf16.gmra.mrb[0].mxu0 %v554
    %v863 = vpop.f32.mrb[0].mxu0
    %v864 = vadd.f32 %v595, %v863
    %v865 = vpop.f32.mrb[0].mxu0
    %v866 = vpop.f32.mrb[0].mxu0
    %v867 = vadd.f32 %v595, %v866
    %v868 = vpop.f32.mrb[0].mxu0
    %869 = vmatprep.mubr.bf16.mxu0 %v557
    %870 = vmatmul.mubr.bf16.gmra.mrb[0].mxu0 %v556
    %v871 = vpop.f32.mrb[0].mxu0
    %v872 = vadd.f32 %v595, %v871
    %v873 = vpop.f32.mrb[0].mxu0
    %v874 = vpop.f32.mrb[0].mxu0
    %v875 = vadd.f32 %v595, %v874
    %v876 = vpop.f32.mrb[0].mxu0
    %877 = vdwg.mxu0
    %878 = vst [vmem:[#allocation2] sm:$0xff] %v728
    %879 = vst [vmem:[#allocation2 + $0x8] sm:$0xff] %v731
    %880 = vst [vmem:[#allocation2 + $0x10] sm:$0xff] %v736
    %881 = vst [vmem:[#allocation2 + $0x18] sm:$0xff] %v739
    %882 = vst [vmem:[#allocation2 + $0x20] sm:$0xff] %v744
    %883 = vst [vmem:[#allocation2 + $0x28] sm:$0xff] %v747
    %884 = vst [vmem:[#allocation2 + $0x30] sm:$0xff] %v752
    %885 = vst [vmem:[#allocation2 + $0x38] sm:$0xff] %v755
    %886 = vst [vmem:[#allocation2 + $0x40] sm:$0xff] %v760
    %887 = vst [vmem:[#allocation2 + $0x48] sm:$0xff] %v763
    %888 = vst [vmem:[#allocation2 + $0x50] sm:$0xff] %v768
    %889 = vst [vmem:[#allocation2 + $0x58] sm:$0xff] %v771
    %890 = vst [vmem:[#allocation2 + $0x60] sm:$0xff] %v776
    %891 = vst [vmem:[#allocation2 + $0x68] sm:$0xff] %v779
    %892 = vst [vmem:[#allocation2 + $0x70] sm:$0xff] %v784
    %893 = vst [vmem:[#allocation2 + $0x78] sm:$0xff] %v787
    %894 = vst [vmem:[#allocation2 + $0x80] sm:$0xff] %v792
    %895 = vst [vmem:[#allocation2 + $0x88] sm:$0xff] %v795
    %896 = vst [vmem:[#allocation2 + $0x90] sm:$0xff] %v800
    %897 = vst [vmem:[#allocation2 + $0x98] sm:$0xff] %v803
    %898 = vst [vmem:[#allocation2 + $0xa0] sm:$0xff] %v808
    %899 = vst [vmem:[#allocation2 + $0xa8] sm:$0xff] %v811
    %900 = vst [vmem:[#allocation2 + $0xb0] sm:$0xff] %v816
    %901 = vst [vmem:[#allocation2 + $0xb8] sm:$0xff] %v819
    %902 = vst [vmem:[#allocation2 + $0xc0] sm:$0xff] %v824
    %903 = vst [vmem:[#allocation2 + $0xc8] sm:$0xff] %v827
    %904 = vst [vmem:[#allocation2 + $0xd0] sm:$0xff] %v832
    %905 = vst [vmem:[#allocation2 + $0xd8] sm:$0xff] %v835
    %906 = vst [vmem:[#allocation2 + $0xe0] sm:$0xff] %v840
    %907 = vst [vmem:[#allocation2 + $0xe8] sm:$0xff] %v843
    %908 = vst [vmem:[#allocation2 + $0xf0] sm:$0xff] %v848
    %909 = vst [vmem:[#allocation2 + $0xf8] sm:$0xff] %v851
    %910 = vst [vmem:[#allocation2 + $0x100] sm:$0xff] %v856
    %911 = vst [vmem:[#allocation2 + $0x108] sm:$0xff] %v859
    %912 = vst [vmem:[#allocation2 + $0x110] sm:$0xff] %v864
    %913 = vst [vmem:[#allocation2 + $0x118] sm:$0xff] %v867
    %914 = vst [vmem:[#allocation2 + $0x120] sm:$0xff] %v872
    %915 = vst [vmem:[#allocation2 + $0x128] sm:$0xff] %v875
    // Predicated region
    $region22: #{tpu_custom_call.1} parent=1 // pred_check
      _
    $region23: #{tpu_custom_call.1} parent=1 // pred_check_branch
      %917 = sbr.rel (0) target = $region25
    $region24: #{tpu_custom_call.1} parent=1 // pred_region
      %s919 = ssub.s32 4864, 4864
      %920 = vsyncadd [#allocation3], %s919
      %s921 = sshll.u32 [#allocation2], 4
      %s922 = int_to_ptr.vmem [resolvable:$true] %s921
      %927 = dma.vmem_to_hbm [thread:$0]  %s922, 4864, %s5, [#allocation3], 128, 128, 8
    $region25: #{tpu_custom_call.1} parent=1 // pred_fallthru
      _
    // Predicated region
    $region26: #{tpu_custom_call.1} parent=1 // pred_check
      _
    $region27: #{tpu_custom_call.1} parent=1 // pred_check_branch
      %929 = sbr.rel (0) target = $region29
    $region28: #{tpu_custom_call.1} parent=1 // pred_region
      %930 = dma.done [#allocation3], 4864
    $region29: #{tpu_custom_call.1} parent=1 // pred_fallthru
      _
    %931 = vsyncpa [#allocation3], 1

// kernel: tpu_custom_call.1
$region0: #{tpu_custom_call.1}
  #allocation0 [shape = 'u32[]', space=smem, size = 0x4, offset = 0x4, fixed_abs, tag = 'smem constant byte address 0x4 - core index']
  #allocation1 [shape = 'u32[144,128]{1,0:T(1,128)}', space=vmem, size = 0x12000, scoped, tag = 'internal scratch']
  %s0 = inlined_call_operand.vmem [shape: f32[304,96], index: 0, kind: input, shape index: {}]
  %s1 = inlined_call_operand.vmem [shape: bf16[96,256], index: 1, kind: input, shape index: {}]
  %s2 = inlined_call_operand.vmem [shape: f32[1,256], index: 2, kind: input, shape index: {}]
  %s3 = inlined_call_operand.vmem [shape: bf16[256,128], index: 3, kind: input, shape index: {}]
  %s4 = inlined_call_operand.vmem [shape: f32[1,128], index: 4, kind: input, shape index: {}]
  %s5 = inlined_call_operand.hbm [shape: f32[304,128], index: 5, kind: output, shape index: {}]
  %s6 = sld [smem:[#allocation0]]
  $region30: #{tpu_custom_call.1} parent=0
    _
  %s8 = ssub.s32 1, %s6
  %s9 = scalar_select 0, %s8, %s6
  $region1: #{tpu_custom_call.1} parent=0
    #allocation2 [shape = 'u8[155648]{0}', space=vmem, size = 0x26000, scoped, tag = 'output window, operand 0, single buffered']
    #allocation3 [shape = 's32[1]{0}', space=sflag, size = 0x4, scoped, tag = 'scoped memory for tpu_custom_call.1']
    %10 = vsyncpa [#allocation3], 0
    // Predicated region
    $region2: #{tpu_custom_call.1} parent=1 // pred_check
      _
    $region3: #{tpu_custom_call.1} parent=1 // pred_check_branch
      %12 = sbr.rel (0) target = $region5
    $region4: #{tpu_custom_call.1} parent=1 // pred_region
      _
    $region5: #{tpu_custom_call.1} parent=1 // pred_fallthru
      _
    // Predicated region
    $region6: #{tpu_custom_call.1} parent=1 // pred_check
      _
    $region7: #{tpu_custom_call.1} parent=1 // pred_check_branch
      %14 = sbr.rel (0) target = $region9
    $region8: #{tpu_custom_call.1} parent=1 // pred_region
      _
    $region9: #{tpu_custom_call.1} parent=1 // pred_fallthru
      _
    // Predicated region
    $region10: #{tpu_custom_call.1} parent=1 // pred_check
      _
    $region11: #{tpu_custom_call.1} parent=1 // pred_check_branch
      %16 = sbr.rel (0) target = $region13
    $region12: #{tpu_custom_call.1} parent=1 // pred_region
      _
    $region13: #{tpu_custom_call.1} parent=1 // pred_fallthru
      _
    // Predicated region
    $region14: #{tpu_custom_call.1} parent=1 // pred_check
      _
    $region15: #{tpu_custom_call.1} parent=1 // pred_check_branch
      %18 = sbr.rel (0) target = $region17
    $region16: #{tpu_custom_call.1} parent=1 // pred_region
      _
    $region17: #{tpu_custom_call.1} parent=1 // pred_fallthru
      _
    // Predicated region
    $region18: #{tpu_custom_call.1} parent=1 // pred_check
      _
    $region19: #{tpu_custom_call.1} parent=1 // pred_check_branch
      %20 = sbr.rel (0) target = $region21
    $region20: #{tpu_custom_call.1} parent=1 // pred_region
      _
    $region21: #{tpu_custom_call.1} parent=1 // pred_fallthru
      _
    %v22 = vld [vmem:[%s0] sm:$0xff]
    %v23 = vld [vmem:[%s0 + $0x8] sm:$0xff]
    %v24 = vld [vmem:[%s0 + $0x10] sm:$0xff]
    %v25 = vld [vmem:[%s0 + $0x18] sm:$0xff]
    %v26 = vld [vmem:[%s0 + $0x20] sm:$0xff]
    %v27 = vld [vmem:[%s0 + $0x28] sm:$0xff]
    %v28 = vld [vmem:[%s0 + $0x30] sm:$0xff]
    %v29 = vld [vmem:[%s0 + $0x38] sm:$0xff]
    %v30 = vld [vmem:[%s0 + $0x40] sm:$0xff]
    %v31 = vld [vmem:[%s0 + $0x48] sm:$0xff]
    %v32 = vld [vmem:[%s0 + $0x50] sm:$0xff]
    %v33 = vld [vmem:[%s0 + $0x58] sm:$0xff]
    %v34 = vld [vmem:[%s0 + $0x60] sm:$0xff]
    %v35 = vld [vmem:[%s0 + $0x68] sm:$0xff]
    %v36 = vld [vmem:[%s0 + $0x70] sm:$0xff]
    %v37 = vld [vmem:[%s0 + $0x78] sm:$0xff]
    %v38 = vld [vmem:[%s0 + $0x80] sm:$0xff]
    %v39 = vld [vmem:[%s0 + $0x88] sm:$0xff]
    %v40 = vld [vmem:[%s0 + $0x90] sm:$0xff]
    %v41 = vld [vmem:[%s0 + $0x98] sm:$0xff]
    %v42 = vld [vmem:[%s0 + $0xa0] sm:$0xff]
    %v43 = vld [vmem:[%s0 + $0xa8] sm:$0xff]
    %v44 = vld [vmem:[%s0 + $0xb0] sm:$0xff]
    %v45 = vld [vmem:[%s0 + $0xb8] sm:$0xff]
    %v46 = vld [vmem:[%s0 + $0xc0] sm:$0xff]
    %v47 = vld [vmem:[%s0 + $0xc8] sm:$0xff]
    %v48 = vld [vmem:[%s0 + $0xd0] sm:$0xff]
    %v49 = vld [vmem:[%s0 + $0xd8] sm:$0xff]
    %v50 = vld [vmem:[%s0 + $0xe0] sm:$0xff]
    %v51 = vld [vmem:[%s0 + $0xe8] sm:$0xff]
    %v52 = vld [vmem:[%s0 + $0xf0] sm:$0xff]
    %v53 = vld [vmem:[%s0 + $0xf8] sm:$0xff]
    %v54 = vld [vmem:[%s0 + $0x100] sm:$0xff]
    %v55 = vld [vmem:[%s0 + $0x108] sm:$0xff]
    %v56 = vld [vmem:[%s0 + $0x110] sm:$0xff]
    %v57 = vld [vmem:[%s0 + $0x118] sm:$0xff]
    %v58 = vld [vmem:[%s0 + $0x120] sm:$0xff]
    %v59 = vld [vmem:[%s0 + $0x128] sm:$0xff]
    %v60 = vpack.c.bf16 %v23, %v22
    %v61 = vpack.c.bf16 %v25, %v24
    %v62 = vpack.c.bf16 %v27, %v26
    %v63 = vpack.c.bf16 %v29, %v28
    %v64 = vpack.c.bf16 %v31, %v30
    %v65 = vpack.c.bf16 %v33, %v32
    %v66 = vpack.c.bf16 %v35, %v34
    %v67 = vpack.c.bf16 %v37, %v36
    %v68 = vpack.c.bf16 %v39, %v38
    %v69 = vpack.c.bf16 %v41, %v40
    %v70 = vpack.c.bf16 %v43, %v42
    %v71 = vpack.c.bf16 %v45, %v44
    %v72 = vpack.c.bf16 %v47, %v46
    %v73 = vpack.c.bf16 %v49, %v48
    %v74 = vpack.c.bf16 %v51, %v50
    %v75 = vpack.c.bf16 %v53, %v52
    %v76 = vpack.c.bf16 %v55, %v54
    %v77 = vpack.c.bf16 %v57, %v56
    %v78 = vpack.c.bf16 %v59, %v58
    %v79 = vld [vmem:[%s1] sm:$0xff]
    %v80 = vld [vmem:[%s1 + $0x8] sm:$0xff]
    %v81 = vld [vmem:[%s1 + $0x10] sm:$0xff]
    %v82 = vld [vmem:[%s1 + $0x18] sm:$0xff]
    %v83 = vld [vmem:[%s1 + $0x20] sm:$0xff]
    %v84 = vld [vmem:[%s1 + $0x28] sm:$0xff]
    %v85 = vld [vmem:[%s1 + $0x30] sm:$0xff]
    %v86 = vld [vmem:[%s1 + $0x38] sm:$0xff]
    %v87 = vld [vmem:[%s1 + $0x40] sm:$0xff]
    %v88 = vld [vmem:[%s1 + $0x48] sm:$0xff]
    %v89 = vld [vmem:[%s1 + $0x50] sm:$0xff]
    %v90 = vld [vmem:[%s1 + $0x58] sm:$0xff]
    %v91 = vld [vmem:[%s2] sm:$0x3]
    %v93 = vlaneseq
    %v94 = vshrl.u32 %v93, 7
    %v95 = vsub.s32 0, %v94
    %v96 = vrot.slane %v91, %v95
    %v97 = vlaneseq
    %v98 = vshrl.u32 %v97, 7
    %v99 = vsub.s32 1, %v98
    %v100 = vrot.slane %v91, %v99
    %v115 = vunpack.c.l.b16 %v79
    %v116 = vunpack.c.h.b16 %v79
    %v117 = vunpack.c.l.b16 %v80
    %v118 = vunpack.c.h.b16 %v80
    %v119 = vunpack.c.l.b16 %v81
    %v120 = vunpack.c.h.b16 %v81
    %v121 = vunpack.c.l.b16 %v82
    %v122 = vunpack.c.h.b16 %v82
    %v123 = vunpack.c.l.b16 %v83
    %v124 = vunpack.c.h.b16 %v83
    %v125 = vunpack.c.l.b16 %v84
    %v126 = vunpack.c.h.b16 %v84
    %v127 = vunpack.c.l.b16 %v85
    %v128 = vunpack.c.h.b16 %v85
    %v129 = vunpack.c.l.b16 %v86
    %v130 = vunpack.c.h.b16 %v86
    %v131 = vunpack.c.l.b16 %v87
    %v132 = vunpack.c.h.b16 %v87
    %v133 = vunpack.c.l.b16 %v88
    %v134 = vunpack.c.h.b16 %v88
    %v135 = vunpack.c.l.b16 %v89
    %v136 = vunpack.c.h.b16 %v89
    %v137 = vunpack.c.l.b16 %v90
    %v138 = vunpack.c.h.b16 %v90
    %v139 = vpack.c.b16 %v117, %v115
    %v140 = vpack.c.b16 %v118, %v116
    %v141 = vpack.c.b16 %v121, %v119
    %v142 = vpack.c.b16 %v122, %v120
    %v143 = vpack.c.b16 %v125, %v123
    %v144 = vpack.c.b16 %v126, %v124
    %v145 = vpack.c.b16 %v129, %v127
    %v146 = vpack.c.b16 %v130, %v128
    %v147 = vpack.c.b16 %v133, %v131
    %v148 = vpack.c.b16 %v134, %v132
    %v149 = vpack.c.b16 %v137, %v135
    %v150 = vpack.c.b16 %v138, %v136
    %vm163 = vcmask 785408
    %v165 = vsel %vm163, %v60, 0
    %v168 = vsel %vm163, %v61, 0
    %v171 = vsel %vm163, %v62, 0
    %v174 = vsel %vm163, %v63, 0
    %v177 = vsel %vm163, %v64, 0
    %v180 = vsel %vm163, %v65, 0
    %v183 = vsel %vm163, %v66, 0
    %v186 = vsel %vm163, %v67, 0
    %v189 = vsel %vm163, %v68, 0
    %v192 = vsel %vm163, %v69, 0
    %v195 = vsel %vm163, %v70, 0
    %v198 = vsel %vm163, %v71, 0
    %v201 = vsel %vm163, %v72, 0
    %v204 = vsel %vm163, %v73, 0
    %v207 = vsel %vm163, %v74, 0
    %v210 = vsel %vm163, %v75, 0
    %v213 = vsel %vm163, %v76, 0
    %v216 = vsel %vm163, %v77, 0
    %v219 = vsel %vm163, %v78, 0
    %221 = vmatprep.subr.bf16.mxu0 %v140
    %222 = vmatpush1.bf16.msra.mxu0 %v139
    %223 = vmatprep.subr.bf16.mxu0 %v142
    %224 = vmatpush1.bf16.msra.mxu0 %v141
    %225 = vmatprep.subr.bf16.mxu0 %v144
    %226 = vmatpush1.bf16.msra.mxu0 %v143
    %227 = vmatprep.subr.bf16.mxu0 %v146
    %228 = vmatpush1.bf16.msra.mxu0 %v145
    %229 = vmatprep.subr.bf16.mxu0 %v148
    %230 = vmatpush1.bf16.msra.mxu0 %v147
    %231 = vmatprep.subr.bf16.mxu0 %v150
    %232 = vmatpush1.bf16.msra.mxu0 %v149
    %233 = vmatprep.subr.bf16.mxu0 0
    %234 = vmatpush1.bf16.msra.mxu0 0
    %235 = vmatprep.subr.bf16.mxu0 0
    %236 = vmatpush1.bf16.msra.mxu0 0
    %237 = vmatprep.subr.bf16.mxu0 0
    %238 = vmatpush1.bf16.msra.mxu0 0
    %239 = vmatprep.subr.bf16.mxu0 0
    %240 = vmatpush1.bf16.msra.mxu0 0
    %241 = vmatprep.subr.bf16.mxu0 0
    %242 = vmatpush1.bf16.msra.mxu0 0
    %243 = vmatprep.subr.bf16.mxu0 0
    %244 = vmatpush1.bf16.msra.mxu0 0
    %245 = vmatprep.subr.bf16.mxu0 0
    %246 = vmatpush1.bf16.msra.mxu0 0
    %247 = vmatprep.subr.bf16.mxu0 0
    %248 = vmatpush1.bf16.msra.mxu0 0
    %249 = vmatprep.subr.bf16.mxu0 0
    %250 = vmatpush1.bf16.msra.mxu0 0
    %251 = vmatprep.subr.bf16.mxu0 0
    %252 = vmatpush1.bf16.msra.mxu0 0
    %253 = vmatprep.mubr.bf16.mxu0 0
    %254 = vmatmul.mubr.bf16.gmra.mrb[0].mxu0 %v165
    %v255 = vpop.f32.mrb[0].mxu0
    %v256 = vadd.f32 %v96, %v255
    %v257 = vpop.f32.mrb[0].mxu0
    %v258 = vadd.f32 %v100, %v257
    %v259 = vpop.f32.mrb[0].mxu0
    %v260 = vadd.f32 %v96, %v259
    %v261 = vpop.f32.mrb[0].mxu0
    %v262 = vadd.f32 %v100, %v261
    %263 = vmatprep.mubr.bf16.mxu0 0
    %264 = vmatmul.mubr.bf16.gmra.mrb[0].mxu0 %v168
    %v265 = vpop.f32.mrb[0].mxu0
    %v266 = vadd.f32 %v96, %v265
    %v267 = vpop.f32.mrb[0].mxu0
    %v268 = vadd.f32 %v100, %v267
    %v269 = vpop.f32.mrb[0].mxu0
    %v270 = vadd.f32 %v96, %v269
    %v271 = vpop.f32.mrb[0].mxu0
    %v272 = vadd.f32 %v100, %v271
    %273 = vmatprep.mubr.bf16.mxu0 0
    %274 = vmatmul.mubr.bf16.gmra.mrb[0].mxu0 %v171
    %v275 = vpop.f32.mrb[0].mxu0
    %v276 = vadd.f32 %v96, %v275
    %v277 = vpop.f32.mrb[0].mxu0
    %v278 = vadd.f32 %v100, %v277
    %v279 = vpop.f32.mrb[0].mxu0
    %v280 = vadd.f32 %v96, %v279
    %v281 = vpop.f32.mrb[0].mxu0
    %v282 = vadd.f32 %v100, %v281
    %283 = vmatprep.mubr.bf16.mxu0 0
    %284 = vmatmul.mubr.bf16.gmra.mrb[0].mxu0 %v174
    %v285 = vpop.f32.mrb[0].mxu0
    %v286 = vadd.f32 %v96, %v285
    %v287 = vpop.f32.mrb[0].mxu0
    %v288 = vadd.f32 %v100, %v287
    %v289 = vpop.f32.mrb[0].mxu0
    %v290 = vadd.f32 %v96, %v289
    %v291 = vpop.f32.mrb[0].mxu0
    %v292 = vadd.f32 %v100, %v291
    %293 = vmatprep.mubr.bf16.mxu0 0
    %294 = vmatmul.mubr.bf16.gmra.mrb[0].mxu0 %v177
    %v295 = vpop.f32.mrb[0].mxu0
    %v296 = vadd.f32 %v96, %v295
    %v297 = vpop.f32.mrb[0].mxu0
    %v298 = vadd.f32 %v100, %v297
    %v299 = vpop.f32.mrb[0].mxu0
    %v300 = vadd.f32 %v96, %v299
    %v301 = vpop.f32.mrb[0].mxu0
    %v302 = vadd.f32 %v100, %v301
    %303 = vmatprep.mubr.bf16.mxu0 0
    %304 = vmatmul.mubr.bf16.gmra.mrb[0].mxu0 %v180
    %v305 = vpop.f32.mrb[0].mxu0
    %v306 = vadd.f32 %v96, %v305
    %v307 = vpop.f32.mrb[0].mxu0
    %v308 = vadd.f32 %v100, %v307
    %v309 = vpop.f32.mrb[0].mxu0
    %v310 = vadd.f32 %v96, %v309
    %v311 = vpop.f32.mrb[0].mxu0
    %v312 = vadd.f32 %v100, %v311
    %313 = vmatprep.mubr.bf16.mxu0 0
    %314 = vmatmul.mubr.bf16.gmra.mrb[0].mxu0 %v183
    %v315 = vpop.f32.mrb[0].mxu0
    %v316 = vadd.f32 %v96, %v315
    %v317 = vpop.f32.mrb[0].mxu0
    %v318 = vadd.f32 %v100, %v317
    %v319 = vpop.f32.mrb[0].mxu0
    %v320 = vadd.f32 %v96, %v319
    %v321 = vpop.f32.mrb[0].mxu0
    %v322 = vadd.f32 %v100, %v321
    %323 = vmatprep.mubr.bf16.mxu0 0
    %324 = vmatmul.mubr.bf16.gmra.mrb[0].mxu0 %v186
    %v325 = vpop.f32.mrb[0].mxu0
    %v326 = vadd.f32 %v96, %v325
    %v327 = vpop.f32.mrb[0].mxu0
    %v328 = vadd.f32 %v100, %v327
    %v329 = vpop.f32.mrb[0].mxu0
    %v330 = vadd.f32 %v96, %v329
    %v331 = vpop.f32.mrb[0].mxu0
    %v332 = vadd.f32 %v100, %v331
    %333 = vmatprep.mubr.bf16.mxu0 0
    %334 = vmatmul.mubr.bf16.gmra.mrb[0].mxu0 %v189
    %v335 = vpop.f32.mrb[0].mxu0
    %v336 = vadd.f32 %v96, %v335
    %v337 = vpop.f32.mrb[0].mxu0
    %v338 = vadd.f32 %v100, %v337
    %v339 = vpop.f32.mrb[0].mxu0
    %v340 = vadd.f32 %v96, %v339
    %v341 = vpop.f32.mrb[0].mxu0
    %v342 = vadd.f32 %v100, %v341
    %343 = vmatprep.mubr.bf16.mxu0 0
    %344 = vmatmul.mubr.bf16.gmra.mrb[0].mxu0 %v192
    %v345 = vpop.f32.mrb[0].mxu0
    %v346 = vadd.f32 %v96, %v345
    %v347 = vpop.f32.mrb[0].mxu0
    %v348 = vadd.f32 %v100, %v347
    %v349 = vpop.f32.mrb[0].mxu0
    %v350 = vadd.f32 %v96, %v349
    %v351 = vpop.f32.mrb[0].mxu0
    %v352 = vadd.f32 %v100, %v351
    %353 = vmatprep.mubr.bf16.mxu0 0
    %354 = vmatmul.mubr.bf16.gmra.mrb[0].mxu0 %v195
    %v355 = vpop.f32.mrb[0].mxu0
    %v356 = vadd.f32 %v96, %v355
    %v357 = vpop.f32.mrb[0].mxu0
    %v358 = vadd.f32 %v100, %v357
    %v359 = vpop.f32.mrb[0].mxu0
    %v360 = vadd.f32 %v96, %v359
    %v361 = vpop.f32.mrb[0].mxu0
    %v362 = vadd.f32 %v100, %v361
    %363 = vmatprep.mubr.bf16.mxu0 0
    %364 = vmatmul.mubr.bf16.gmra.mrb[0].mxu0 %v198
    %v365 = vpop.f32.mrb[0].mxu0
    %v366 = vadd.f32 %v96, %v365
    %v367 = vpop.f32.mrb[0].mxu0
    %v368 = vadd.f32 %v100, %v367
    %v369 = vpop.f32.mrb[0].mxu0
    %v370 = vadd.f32 %v96, %v369
    %v371 = vpop.f32.mrb[0].mxu0
    %v372 = vadd.f32 %v100, %v371
    %373 = vmatprep.mubr.bf16.mxu0 0
    %374 = vmatmul.mubr.bf16.gmra.mrb[0].mxu0 %v201
    %v375 = vpop.f32.mrb[0].mxu0
    %v376 = vadd.f32 %v96, %v375
    %v377 = vpop.f32.mrb[0].mxu0
    %v378 = vadd.f32 %v100, %v377
    %v379 = vpop.f32.mrb[0].mxu0
    %v380 = vadd.f32 %v96, %v379
    %v381 = vpop.f32.mrb[0].mxu0
    %v382 = vadd.f32 %v100, %v381
    %383 = vmatprep.mubr.bf16.mxu0 0
    %384 = vmatmul.mubr.bf16.gmra.mrb[0].mxu0 %v204
    %v385 = vpop.f32.mrb[0].mxu0
    %v386 = vadd.f32 %v96, %v385
    %v387 = vpop.f32.mrb[0].mxu0
    %v388 = vadd.f32 %v100, %v387
    %v389 = vpop.f32.mrb[0].mxu0
    %v390 = vadd.f32 %v96, %v389
    %v391 = vpop.f32.mrb[0].mxu0
    %v392 = vadd.f32 %v100, %v391
    %393 = vmatprep.mubr.bf16.mxu0 0
    %394 = vmatmul.mubr.bf16.gmra.mrb[0].mxu0 %v207
    %v395 = vpop.f32.mrb[0].mxu0
    %v396 = vadd.f32 %v96, %v395
    %v397 = vpop.f32.mrb[0].mxu0
    %v398 = vadd.f32 %v100, %v397
    %v399 = vpop.f32.mrb[0].mxu0
    %v400 = vadd.f32 %v96, %v399
    %v401 = vpop.f32.mrb[0].mxu0
    %v402 = vadd.f32 %v100, %v401
    %403 = vmatprep.mubr.bf16.mxu0 0
    %404 = vmatmul.mubr.bf16.gmra.mrb[0].mxu0 %v210
    %v405 = vpop.f32.mrb[0].mxu0
    %v406 = vadd.f32 %v96, %v405
    %v407 = vpop.f32.mrb[0].mxu0
    %v408 = vadd.f32 %v100, %v407
    %v409 = vpop.f32.mrb[0].mxu0
    %v410 = vadd.f32 %v96, %v409
    %v411 = vpop.f32.mrb[0].mxu0
    %v412 = vadd.f32 %v100, %v411
    %413 = vmatprep.mubr.bf16.mxu0 0
    %414 = vmatmul.mubr.bf16.gmra.mrb[0].mxu0 %v213
    %v415 = vpop.f32.mrb[0].mxu0
    %v416 = vadd.f32 %v96, %v415
    %v417 = vpop.f32.mrb[0].mxu0
    %v418 = vadd.f32 %v100, %v417
    %v419 = vpop.f32.mrb[0].mxu0
    %v420 = vadd.f32 %v96, %v419
    %v421 = vpop.f32.mrb[0].mxu0
    %v422 = vadd.f32 %v100, %v421
    %423 = vmatprep.mubr.bf16.mxu0 0
    %424 = vmatmul.mubr.bf16.gmra.mrb[0].mxu0 %v216
    %v425 = vpop.f32.mrb[0].mxu0
    %v426 = vadd.f32 %v96, %v425
    %v427 = vpop.f32.mrb[0].mxu0
    %v428 = vadd.f32 %v100, %v427
    %v429 = vpop.f32.mrb[0].mxu0
    %v430 = vadd.f32 %v96, %v429
    %v431 = vpop.f32.mrb[0].mxu0
    %v432 = vadd.f32 %v100, %v431
    %433 = vmatprep.mubr.bf16.mxu0 0
    %434 = vmatmul.mubr.bf16.gmra.mrb[0].mxu0 %v219
    %v435 = vpop.f32.mrb[0].mxu0
    %v436 = vadd.f32 %v96, %v435
    %v437 = vpop.f32.mrb[0].mxu0
    %v438 = vadd.f32 %v100, %v437
    %v439 = vpop.f32.mrb[0].mxu0
    %v440 = vadd.f32 %v96, %v439
    %v441 = vpop.f32.mrb[0].mxu0
    %v442 = vadd.f32 %v100, %v441
    %443 = vdwg.mxu0
    %v444 = vmax.f32 %v256, 0.0
    %v445 = vmax.f32 %v258, 0.0
    %v446 = vmax.f32 %v260, 0.0
    %v447 = vmax.f32 %v262, 0.0
    %v448 = vmax.f32 %v266, 0.0
    %v449 = vmax.f32 %v268, 0.0
    %v450 = vmax.f32 %v270, 0.0
    %v451 = vmax.f32 %v272, 0.0
    %v452 = vmax.f32 %v276, 0.0
    %v453 = vmax.f32 %v278, 0.0
    %v454 = vmax.f32 %v280, 0.0
    %v455 = vmax.f32 %v282, 0.0
    %v456 = vmax.f32 %v286, 0.0
    %v457 = vmax.f32 %v288, 0.0
    %v458 = vmax.f32 %v290, 0.0
    %v459 = vmax.f32 %v292, 0.0
    %v460 = vmax.f32 %v296, 0.0
    %v461 = vmax.f32 %v298, 0.0
    %v462 = vmax.f32 %v300, 0.0
    %v463 = vmax.f32 %v302, 0.0
    %v464 = vmax.f32 %v306, 0.0
    %v465 = vmax.f32 %v308, 0.0
    %v466 = vmax.f32 %v310, 0.0
    %v467 = vmax.f32 %v312, 0.0
    %v468 = vmax.f32 %v316, 0.0
    %v469 = vmax.f32 %v318, 0.0
    %v470 = vmax.f32 %v320, 0.0
    %v471 = vmax.f32 %v322, 0.0
    %v472 = vmax.f32 %v326, 0.0
    %v473 = vmax.f32 %v328, 0.0
    %v474 = vmax.f32 %v330, 0.0
    %v475 = vmax.f32 %v332, 0.0
    %v476 = vmax.f32 %v336, 0.0
    %v477 = vmax.f32 %v338, 0.0
    %v478 = vmax.f32 %v340, 0.0
    %v479 = vmax.f32 %v342, 0.0
    %v480 = vmax.f32 %v346, 0.0
    %v481 = vmax.f32 %v348, 0.0
    %v482 = vmax.f32 %v350, 0.0
    %v483 = vmax.f32 %v352, 0.0
    %v484 = vmax.f32 %v356, 0.0
    %v485 = vmax.f32 %v358, 0.0
    %v486 = vmax.f32 %v360, 0.0
    %v487 = vmax.f32 %v362, 0.0
    %v488 = vmax.f32 %v366, 0.0
    %v489 = vmax.f32 %v368, 0.0
    %v490 = vmax.f32 %v370, 0.0
    %v491 = vmax.f32 %v372, 0.0
    %v492 = vmax.f32 %v376, 0.0
    %v493 = vmax.f32 %v378, 0.0
    %v494 = vmax.f32 %v380, 0.0
    %v495 = vmax.f32 %v382, 0.0
    %v496 = vmax.f32 %v386, 0.0
    %v497 = vmax.f32 %v388, 0.0
    %v498 = vmax.f32 %v390, 0.0
    %v499 = vmax.f32 %v392, 0.0
    %v500 = vmax.f32 %v396, 0.0
    %v501 = vmax.f32 %v398, 0.0
    %v502 = vmax.f32 %v400, 0.0
    %v503 = vmax.f32 %v402, 0.0
    %v504 = vmax.f32 %v406, 0.0
    %v505 = vmax.f32 %v408, 0.0
    %v506 = vmax.f32 %v410, 0.0
    %v507 = vmax.f32 %v412, 0.0
    %v508 = vmax.f32 %v416, 0.0
    %v509 = vmax.f32 %v418, 0.0
    %v510 = vmax.f32 %v420, 0.0
    %v511 = vmax.f32 %v422, 0.0
    %v512 = vmax.f32 %v426, 0.0
    %v513 = vmax.f32 %v428, 0.0
    %v514 = vmax.f32 %v430, 0.0
    %v515 = vmax.f32 %v432, 0.0
    %v516 = vmax.f32 %v436, 0.0
    %v517 = vmax.f32 %v438, 0.0
    %v518 = vmax.f32 %v440, 0.0
    %v519 = vmax.f32 %v442, 0.0
    %v520 = vpack.c.bf16 %v446, %v444
    %v521 = vpack.c.bf16 %v447, %v445
    %v522 = vpack.c.bf16 %v450, %v448
    %v523 = vpack.c.bf16 %v451, %v449
    %v524 = vpack.c.bf16 %v454, %v452
    %v525 = vpack.c.bf16 %v455, %v453
    %v526 = vpack.c.bf16 %v458, %v456
    %v527 = vpack.c.bf16 %v459, %v457
    %v528 = vpack.c.bf16 %v462, %v460
    %v529 = vpack.c.bf16 %v463, %v461
    %v530 = vpack.c.bf16 %v466, %v464
    %v531 = vpack.c.bf16 %v467, %v465
    %v532 = vpack.c.bf16 %v470, %v468
    %v533 = vpack.c.bf16 %v471, %v469
    %v534 = vpack.c.bf16 %v474, %v472
    %v535 = vpack.c.bf16 %v475, %v473
    %v536 = vpack.c.bf16 %v478, %v476
    %v537 = vpack.c.bf16 %v479, %v477
    %v538 = vpack.c.bf16 %v482, %v480
    %v539 = vpack.c.bf16 %v483, %v481
    %v540 = vpack.c.bf16 %v486, %v484
    %v541 = vpack.c.bf16 %v487, %v485
    %v542 = vpack.c.bf16 %v490, %v488
    %v543 = vpack.c.bf16 %v491, %v489
    %v544 = vpack.c.bf16 %v494, %v492
    %v545 = vpack.c.bf16 %v495, %v493
    %v546 = vpack.c.bf16 %v498, %v496
    %v547 = vpack.c.bf16 %v499, %v497
    %v548 = vpack.c.bf16 %v502, %v500
    %v549 = vpack.c.bf16 %v503, %v501
    %v550 = vpack.c.bf16 %v506, %v504
    %v551 = vpack.c.bf16 %v507, %v505
    %v552 = vpack.c.bf16 %v510, %v508
    %v553 = vpack.c.bf16 %v511, %v509
    %v554 = vpack.c.bf16 %v514, %v512
    %v555 = vpack.c.bf16 %v515, %v513
    %v556 = vpack.c.bf16 %v518, %v516
    %v557 = vpack.c.bf16 %v519, %v517
    %v558 = vld [vmem:[%s3] sm:$0xf]
    %v559 = vld [vmem:[%s3 + $0x4] sm:$0xf]
    %v560 = vld [vmem:[%s3 + $0x8] sm:$0xf]
    %v561 = vld [vmem:[%s3 + $0xc] sm:$0xf]
    %v562 = vld [vmem:[%s3 + $0x10] sm:$0xf]
    %v563 = vld [vmem:[%s3 + $0x14] sm:$0xf]
    %v564 = vld [vmem:[%s3 + $0x18] sm:$0xf]
    %v565 = vld [vmem:[%s3 + $0x1c] sm:$0xf]
    %v566 = vld [vmem:[%s3 + $0x20] sm:$0xf]
    %v567 = vld [vmem:[%s3 + $0x24] sm:$0xf]
    %v568 = vld [vmem:[%s3 + $0x28] sm:$0xf]
    %v569 = vld [vmem:[%s3 + $0x2c] sm:$0xf]
    %v570 = vld [vmem:[%s3 + $0x30] sm:$0xf]
    %v571 = vld [vmem:[%s3 + $0x34] sm:$0xf]
    %v572 = vld [vmem:[%s3 + $0x38] sm:$0xf]
    %v573 = vld [vmem:[%s3 + $0x3c] sm:$0xf]
    %v574 = vld [vmem:[%s3 + $0x40] sm:$0xf]
    %v575 = vld [vmem:[%s3 + $0x44] sm:$0xf]
    %v576 = vld [vmem:[%s3 + $0x48] sm:$0xf]
    %v577 = vld [vmem:[%s3 + $0x4c] sm:$0xf]
    %v578 = vld [vmem:[%s3 + $0x50] sm:$0xf]
    %v579 = vld [vmem:[%s3 + $0x54] sm:$0xf]
    %v580 = vld [vmem:[%s3 + $0x58] sm:$0xf]
    %v581 = vld [vmem:[%s3 + $0x5c] sm:$0xf]
    %v582 = vld [vmem:[%s3 + $0x60] sm:$0xf]
    %v583 = vld [vmem:[%s3 + $0x64] sm:$0xf]
    %v584 = vld [vmem:[%s3 + $0x68] sm:$0xf]
    %v585 = vld [vmem:[%s3 + $0x6c] sm:$0xf]
    %v586 = vld [vmem:[%s3 + $0x70] sm:$0xf]
    %v587 = vld [vmem:[%s3 + $0x74] sm:$0xf]
    %v588 = vld [vmem:[%s3 + $0x78] sm:$0xf]
    %v589 = vld [vmem:[%s3 + $0x7c] sm:$0xf]
    %v590 = vld [vmem:[%s4] sm:$0x1]
    %v592 = vlaneseq
    %v593 = vshrl.u32 %v592, 7
    %v594 = vsub.s32 0, %v593
    %v595 = vrot.slane %v590, %v594
    %v629 = vunpack.c.l.b16 %v558
    %v630 = vunpack.c.l.b16 %v559
    %v631 = vunpack.c.l.b16 %v560
    %v632 = vunpack.c.l.b16 %v561
    %v633 = vunpack.c.l.b16 %v562
    %v634 = vunpack.c.l.b16 %v563
    %v635 = vunpack.c.l.b16 %v564
    %v636 = vunpack.c.l.b16 %v565
    %v637 = vunpack.c.l.b16 %v566
    %v638 = vunpack.c.l.b16 %v567
    %v639 = vunpack.c.l.b16 %v568
    %v640 = vunpack.c.l.b16 %v569
    %v641 = vunpack.c.l.b16 %v570
    %v642 = vunpack.c.l.b16 %v571
    %v643 = vunpack.c.l.b16 %v572
    %v644 = vunpack.c.l.b16 %v573
    %v645 = vunpack.c.l.b16 %v574
    %v646 = vunpack.c.l.b16 %v575
    %v647 = vunpack.c.l.b16 %v576
    %v648 = vunpack.c.l.b16 %v577
    %v649 = vunpack.c.l.b16 %v578
    %v650 = vunpack.c.l.b16 %v579
    %v651 = vunpack.c.l.b16 %v580
    %v652 = vunpack.c.l.b16 %v581
    %v653 = vunpack.c.l.b16 %v582
    %v654 = vunpack.c.l.b16 %v583
    %v655 = vunpack.c.l.b16 %v584
    %v656 = vunpack.c.l.b16 %v585
    %v657 = vunpack.c.l.b16 %v586
    %v658 = vunpack.c.l.b16 %v587
    %v659 = vunpack.c.l.b16 %v588
    %v660 = vunpack.c.l.b16 %v589
    %v661 = vpack.c.b16 %v630, %v629
    %v662 = vpack.c.b16 %v632, %v631
    %v663 = vpack.c.b16 %v634, %v633
    %v664 = vpack.c.b16 %v636, %v635
    %v665 = vpack.c.b16 %v638, %v637
    %v666 = vpack.c.b16 %v640, %v639
    %v667 = vpack.c.b16 %v642, %v641
    %v668 = vpack.c.b16 %v644, %v643
    %v669 = vpack.c.b16 %v646, %v645
    %v670 = vpack.c.b16 %v648, %v647
    %v671 = vpack.c.b16 %v650, %v649
    %v672 = vpack.c.b16 %v652, %v651
    %v673 = vpack.c.b16 %v654, %v653
    %v674 = vpack.c.b16 %v656, %v655
    %v675 = vpack.c.b16 %v658, %v657
    %v676 = vpack.c.b16 %v660, %v659
    %693 = vmatprep.subr.bf16.mxu0 0
    %694 = vmatpush1.bf16.msra.mxu0 %v661
    %695 = vmatprep.subr.bf16.mxu0 0
    %696 = vmatpush1.bf16.msra.mxu0 %v662
    %697 = vmatprep.subr.bf16.mxu0 0
    %698 = vmatpush1.bf16.msra.mxu0 %v663
    %699 = vmatprep.subr.bf16.mxu0 0
    %700 = vmatpush1.bf16.msra.mxu0 %v664
    %701 = vmatprep.subr.bf16.mxu0 0
    %702 = vmatpush1.bf16.msra.mxu0 %v665
    %703 = vmatprep.subr.bf16.mxu0 0
    %704 = vmatpush1.bf16.msra.mxu0 %v666
    %705 = vmatprep.subr.bf16.mxu0 0
    %706 = vmatpush1.bf16.msra.mxu0 %v667
    %707 = vmatprep.subr.bf16.mxu0 0
    %708 = vmatpush1.bf16.msra.mxu0 %v668
    %709 = vmatprep.subr.bf16.mxu0 0
    %710 = vmatpush1.bf16.msra.mxu0 %v669
    %711 = vmatprep.subr.bf16.mxu0 0
    %712 = vmatpush1.bf16.msra.mxu0 %v670
    %713 = vmatprep.subr.bf16.mxu0 0
    %714 = vmatpush1.bf16.msra.mxu0 %v671
    %715 = vmatprep.subr.bf16.mxu0 0
    %716 = vmatpush1.bf16.msra.mxu0 %v672
    %717 = vmatprep.subr.bf16.mxu0 0
    %718 = vmatpush1.bf16.msra.mxu0 %v673
    %719 = vmatprep.subr.bf16.mxu0 0
    %720 = vmatpush1.bf16.msra.mxu0 %v674
    %721 = vmatprep.subr.bf16.mxu0 0
    %722 = vmatpush1.bf16.msra.mxu0 %v675
    %723 = vmatprep.subr.bf16.mxu0 0
    %724 = vmatpush1.bf16.msra.mxu0 %v676
    %725 = vmatprep.mubr.bf16.mxu0 %v521
    %726 = vmatmul.mubr.bf16.gmra.mrb[0].mxu0 %v520
    %v727 = vpop.f32.mrb[0].mxu0
    %v728 = vadd.f32 %v595, %v727
    %v729 = vpop.f32.mrb[0].mxu0
    %v730 = vpop.f32.mrb[0].mxu0
    %v731 = vadd.f32 %v595, %v730
    %v732 = vpop.f32.mrb[0].mxu0
    %733 = vmatprep.mubr.bf16.mxu0 %v523
    %734 = vmatmul.mubr.bf16.gmra.mrb[0].mxu0 %v522
    %v735 = vpop.f32.mrb[0].mxu0
    %v736 = vadd.f32 %v595, %v735
    %v737 = vpop.f32.mrb[0].mxu0
    %v738 = vpop.f32.mrb[0].mxu0
    %v739 = vadd.f32 %v595, %v738
    %v740 = vpop.f32.mrb[0].mxu0
    %741 = vmatprep.mubr.bf16.mxu0 %v525
    %742 = vmatmul.mubr.bf16.gmra.mrb[0].mxu0 %v524
    %v743 = vpop.f32.mrb[0].mxu0
    %v744 = vadd.f32 %v595, %v743
    %v745 = vpop.f32.mrb[0].mxu0
    %v746 = vpop.f32.mrb[0].mxu0
    %v747 = vadd.f32 %v595, %v746
    %v748 = vpop.f32.mrb[0].mxu0
    %749 = vmatprep.mubr.bf16.mxu0 %v527
    %750 = vmatmul.mubr.bf16.gmra.mrb[0].mxu0 %v526
    %v751 = vpop.f32.mrb[0].mxu0
    %v752 = vadd.f32 %v595, %v751
    %v753 = vpop.f32.mrb[0].mxu0
    %v754 = vpop.f32.mrb[0].mxu0
    %v755 = vadd.f32 %v595, %v754
    %v756 = vpop.f32.mrb[0].mxu0
    %757 = vmatprep.mubr.bf16.mxu0 %v529
    %758 = vmatmul.mubr.bf16.gmra.mrb[0].mxu0 %v528
    %v759 = vpop.f32.mrb[0].mxu0
    %v760 = vadd.f32 %v595, %v759
    %v761 = vpop.f32.mrb[0].mxu0
    %v762 = vpop.f32.mrb[0].mxu0
    %v763 = vadd.f32 %v595, %v762
    %v764 = vpop.f32.mrb[0].mxu0
    %765 = vmatprep.mubr.bf16.mxu0 %v531
    %766 = vmatmul.mubr.bf16.gmra.mrb[0].mxu0 %v530
    %v767 = vpop.f32.mrb[0].mxu0
    %v768 = vadd.f32 %v595, %v767
    %v769 = vpop.f32.mrb[0].mxu0
    %v770 = vpop.f32.mrb[0].mxu0
    %v771 = vadd.f32 %v595, %v770
    %v772 = vpop.f32.mrb[0].mxu0
    %773 = vmatprep.mubr.bf16.mxu0 %v533
    %774 = vmatmul.mubr.bf16.gmra.mrb[0].mxu0 %v532
    %v775 = vpop.f32.mrb[0].mxu0
    %v776 = vadd.f32 %v595, %v775
    %v777 = vpop.f32.mrb[0].mxu0
    %v778 = vpop.f32.mrb[0].mxu0
    %v779 = vadd.f32 %v595, %v778
    %v780 = vpop.f32.mrb[0].mxu0
    %781 = vmatprep.mubr.bf16.mxu0 %v535
    %782 = vmatmul.mubr.bf16.gmra.mrb[0].mxu0 %v534
    %v783 = vpop.f32.mrb[0].mxu0
    %v784 = vadd.f32 %v595, %v783
    %v785 = vpop.f32.mrb[0].mxu0
    %v786 = vpop.f32.mrb[0].mxu0
    %v787 = vadd.f32 %v595, %v786
    %v788 = vpop.f32.mrb[0].mxu0
    %789 = vmatprep.mubr.bf16.mxu0 %v537
    %790 = vmatmul.mubr.bf16.gmra.mrb[0].mxu0 %v536
    %v791 = vpop.f32.mrb[0].mxu0
    %v792 = vadd.f32 %v595, %v791
    %v793 = vpop.f32.mrb[0].mxu0
    %v794 = vpop.f32.mrb[0].mxu0
    %v795 = vadd.f32 %v595, %v794
    %v796 = vpop.f32.mrb[0].mxu0
    %797 = vmatprep.mubr.bf16.mxu0 %v539
    %798 = vmatmul.mubr.bf16.gmra.mrb[0].mxu0 %v538
    %v799 = vpop.f32.mrb[0].mxu0
    %v800 = vadd.f32 %v595, %v799
    %v801 = vpop.f32.mrb[0].mxu0
    %v802 = vpop.f32.mrb[0].mxu0
    %v803 = vadd.f32 %v595, %v802
    %v804 = vpop.f32.mrb[0].mxu0
    %805 = vmatprep.mubr.bf16.mxu0 %v541
    %806 = vmatmul.mubr.bf16.gmra.mrb[0].mxu0 %v540
    %v807 = vpop.f32.mrb[0].mxu0
    %v808 = vadd.f32 %v595, %v807
    %v809 = vpop.f32.mrb[0].mxu0
    %v810 = vpop.f32.mrb[0].mxu0
    %v811 = vadd.f32 %v595, %v810
    %v812 = vpop.f32.mrb[0].mxu0
    %813 = vmatprep.mubr.bf16.mxu0 %v543
    %814 = vmatmul.mubr.bf16.gmra.mrb[0].mxu0 %v542
    %v815 = vpop.f32.mrb[0].mxu0
    %v816 = vadd.f32 %v595, %v815
    %v817 = vpop.f32.mrb[0].mxu0
    %v818 = vpop.f32.mrb[0].mxu0
    %v819 = vadd.f32 %v595, %v818
    %v820 = vpop.f32.mrb[0].mxu0
    %821 = vmatprep.mubr.bf16.mxu0 %v545
    %822 = vmatmul.mubr.bf16.gmra.mrb[0].mxu0 %v544
    %v823 = vpop.f32.mrb[0].mxu0
    %v824 = vadd.f32 %v595, %v823
    %v825 = vpop.f32.mrb[0].mxu0
    %v826 = vpop.f32.mrb[0].mxu0
    %v827 = vadd.f32 %v595, %v826
    %v828 = vpop.f32.mrb[0].mxu0
    %829 = vmatprep.mubr.bf16.mxu0 %v547
    %830 = vmatmul.mubr.bf16.gmra.mrb[0].mxu0 %v546
    %v831 = vpop.f32.mrb[0].mxu0
    %v832 = vadd.f32 %v595, %v831
    %v833 = vpop.f32.mrb[0].mxu0
    %v834 = vpop.f32.mrb[0].mxu0
    %v835 = vadd.f32 %v595, %v834
    %v836 = vpop.f32.mrb[0].mxu0
    %837 = vmatprep.mubr.bf16.mxu0 %v549
    %838 = vmatmul.mubr.bf16.gmra.mrb[0].mxu0 %v548
    %v839 = vpop.f32.mrb[0].mxu0
    %v840 = vadd.f32 %v595, %v839
    %v841 = vpop.f32.mrb[0].mxu0
    %v842 = vpop.f32.mrb[0].mxu0
    %v843 = vadd.f32 %v595, %v842
    %v844 = vpop.f32.mrb[0].mxu0
    %845 = vmatprep.mubr.bf16.mxu0 %v551
    %846 = vmatmul.mubr.bf16.gmra.mrb[0].mxu0 %v550
    %v847 = vpop.f32.mrb[0].mxu0
    %v848 = vadd.f32 %v595, %v847
    %v849 = vpop.f32.mrb[0].mxu0
    %v850 = vpop.f32.mrb[0].mxu0
    %v851 = vadd.f32 %v595, %v850
    %v852 = vpop.f32.mrb[0].mxu0
    %853 = vmatprep.mubr.bf16.mxu0 %v553
    %854 = vmatmul.mubr.bf16.gmra.mrb[0].mxu0 %v552
    %v855 = vpop.f32.mrb[0].mxu0
    %v856 = vadd.f32 %v595, %v855
    %v857 = vpop.f32.mrb[0].mxu0
    %v858 = vpop.f32.mrb[0].mxu0
    %v859 = vadd.f32 %v595, %v858
    %v860 = vpop.f32.mrb[0].mxu0
    %861 = vmatprep.mubr.bf16.mxu0 %v555
    %862 = vmatmul.mubr.bf16.gmra.mrb[0].mxu0 %v554
    %v863 = vpop.f32.mrb[0].mxu0
    %v864 = vadd.f32 %v595, %v863
    %v865 = vpop.f32.mrb[0].mxu0
    %v866 = vpop.f32.mrb[0].mxu0
    %v867 = vadd.f32 %v595, %v866
    %v868 = vpop.f32.mrb[0].mxu0
    %869 = vmatprep.mubr.bf16.mxu0 %v557
    %870 = vmatmul.mubr.bf16.gmra.mrb[0].mxu0 %v556
    %v871 = vpop.f32.mrb[0].mxu0
    %v872 = vadd.f32 %v595, %v871
    %v873 = vpop.f32.mrb[0].mxu0
    %v874 = vpop.f32.mrb[0].mxu0
    %v875 = vadd.f32 %v595, %v874
    %v876 = vpop.f32.mrb[0].mxu0
    %877 = vdwg.mxu0
    %878 = vst [vmem:[#allocation2] sm:$0xff] %v728
    %879 = vst [vmem:[#allocation2 + $0x8] sm:$0xff] %v731
    %880 = vst [vmem:[#allocation2 + $0x10] sm:$0xff] %v736
    %881 = vst [vmem:[#allocation2 + $0x18] sm:$0xff] %v739
    %882 = vst [vmem:[#allocation2 + $0x20] sm:$0xff] %v744
    %883 = vst [vmem:[#allocation2 + $0x28] sm:$0xff] %v747
    %884 = vst [vmem:[#allocation2 + $0x30] sm:$0xff] %v752
    %885 = vst [vmem:[#allocation2 + $0x38] sm:$0xff] %v755
    %886 = vst [vmem:[#allocation2 + $0x40] sm:$0xff] %v760
    %887 = vst [vmem:[#allocation2 + $0x48] sm:$0xff] %v763
    %888 = vst [vmem:[#allocation2 + $0x50] sm:$0xff] %v768
    %889 = vst [vmem:[#allocation2 + $0x58] sm:$0xff] %v771
    %890 = vst [vmem:[#allocation2 + $0x60] sm:$0xff] %v776
    %891 = vst [vmem:[#allocation2 + $0x68] sm:$0xff] %v779
    %892 = vst [vmem:[#allocation2 + $0x70] sm:$0xff] %v784
    %893 = vst [vmem:[#allocation2 + $0x78] sm:$0xff] %v787
    %894 = vst [vmem:[#allocation2 + $0x80] sm:$0xff] %v792
    %895 = vst [vmem:[#allocation2 + $0x88] sm:$0xff] %v795
    %896 = vst [vmem:[#allocation2 + $0x90] sm:$0xff] %v800
    %897 = vst [vmem:[#allocation2 + $0x98] sm:$0xff] %v803
    %898 = vst [vmem:[#allocation2 + $0xa0] sm:$0xff] %v808
    %899 = vst [vmem:[#allocation2 + $0xa8] sm:$0xff] %v811
    %900 = vst [vmem:[#allocation2 + $0xb0] sm:$0xff] %v816
    %901 = vst [vmem:[#allocation2 + $0xb8] sm:$0xff] %v819
    %902 = vst [vmem:[#allocation2 + $0xc0] sm:$0xff] %v824
    %903 = vst [vmem:[#allocation2 + $0xc8] sm:$0xff] %v827
    %904 = vst [vmem:[#allocation2 + $0xd0] sm:$0xff] %v832
    %905 = vst [vmem:[#allocation2 + $0xd8] sm:$0xff] %v835
    %906 = vst [vmem:[#allocation2 + $0xe0] sm:$0xff] %v840
    %907 = vst [vmem:[#allocation2 + $0xe8] sm:$0xff] %v843
    %908 = vst [vmem:[#allocation2 + $0xf0] sm:$0xff] %v848
    %909 = vst [vmem:[#allocation2 + $0xf8] sm:$0xff] %v851
    %910 = vst [vmem:[#allocation2 + $0x100] sm:$0xff] %v856
    %911 = vst [vmem:[#allocation2 + $0x108] sm:$0xff] %v859
    %912 = vst [vmem:[#allocation2 + $0x110] sm:$0xff] %v864
    %913 = vst [vmem:[#allocation2 + $0x118] sm:$0xff] %v867
    %914 = vst [vmem:[#allocation2 + $0x120] sm:$0xff] %v872
    %915 = vst [vmem:[#allocation2 + $0x128] sm:$0xff] %v875
    // Predicated region
    $region22: #{tpu_custom_call.1} parent=1 // pred_check
      _
    $region23: #{tpu_custom_call.1} parent=1 // pred_check_branch
      %917 = sbr.rel (0) target = $region25
    $region24: #{tpu_custom_call.1} parent=1 // pred_region
      %s919 = ssub.s32 4864, 4864
      %920 = vsyncadd [#allocation3], %s919
      %s921 = sshll.u32 [#allocation2], 4
      %s922 = int_to_ptr.vmem [resolvable:$true] %s921
      %927 = dma.vmem_to_hbm [thread:$0]  %s922, 4864, %s5, [#allocation3], 128, 128, 8
    $region25: #{tpu_custom_call.1} parent=1 // pred_fallthru
      _
    // Predicated region
    $region26: #{tpu_custom_call.1} parent=1 // pred_check
      _
    $region27: #{tpu_custom_call.1} parent=1 // pred_check_branch
      %929 = sbr.rel (0) target = $region29
    $region28: #{tpu_custom_call.1} parent=1 // pred_region
      %930 = dma.done [#allocation3], 4864
    $region29: #{tpu_custom_call.1} parent=1 // pred_fallthru
      _
    %931 = vsyncpa [#allocation3], 1

</llo_original>
